<compile_context>
chip_gen: v5e
topology: v5e:2x2
jax: 0.10.0
libtpu: 0.0.40
codegen_flags: <defaults>
</compile_context>

<pallas_src>
import jax
import jax.numpy as jnp
from jax.experimental import pallas as pl
from jax.experimental.pallas import tpu as pltpu

EPS = 1e-5


def _make_kernel(*, N, C, KH, KW, OH, OW, OCP, HH):
    """Fused conv(3x3, stride 2) + BatchNorm(batch stats) + ReLU kernel body."""
    inv_m = 1.0 / float(N * OH * OW)   # 1 / (#positions per channel)

    def kernel(x_ref, w_ref, g_ref, b_ref, o_ref,
               ssum_ref, ssq_ref, scale_ref, shift_ref):
        p = pl.program_id(0)   # 0 = statistics pass, 1 = normalize pass
        n = pl.program_id(1)   # batch element

        # ---- conv for this batch element: y[OH, OW, OCP] in f32.
        #      x_ref is the phase-decomposed image [4*HH, WH, C] where row
        #      (ph*2 + pw)*HH + i, col j, holds x[n, 2i+ph, 2j+pw, :], so every
        #      (kh, kw) tap is a *contiguous* static slice (no strided gather).
        acc = jnp.zeros((OH, OW, OCP), jnp.float32)
        for kh in range(KH):
            for kw in range(KW):
                base = (kh % 2) * (2 * HH) + (kw % 2) * HH + kh // 2
                ws = kw // 2
                xw = x_ref[base:base + OH, ws:ws + OW, :]          # [OH, OW, C]
                for c in range(C):
                    acc = acc + xw[:, :, c:c + 1] * w_ref[kh, kw, c:c + 1, :]
        y = acc   # pre-BN conv output (conv bias omitted: cancelled by BN mean)

        # ---- pass 0: one-pass per-channel sum / sum-of-squares accumulation.
        @pl.when((p == 0) & (n == 0))
        def _init():
            ssum_ref[...] = jnp.zeros_like(ssum_ref)
            ssq_ref[...] = jnp.zeros_like(ssq_ref)

        @pl.when(p == 0)
        def _stats():
            s1 = jnp.sum(jnp.sum(y, axis=0), axis=0, keepdims=True)       # [1, OCP]
            s2 = jnp.sum(jnp.sum(y * y, axis=0), axis=0, keepdims=True)   # [1, OCP]
            ssum_ref[...] = ssum_ref[...] + s1
            ssq_ref[...] = ssq_ref[...] + s2

        # ---- pass 1 (first step): fold BN into a single per-channel scale/shift.
        @pl.when((p == 1) & (n == 0))
        def _fold():
            mean = ssum_ref[...] * inv_m
            var = ssq_ref[...] * inv_m - mean * mean     # biased var (BN training)
            scale = g_ref[...] * jax.lax.rsqrt(var + EPS)
            scale_ref[...] = scale
            shift_ref[...] = b_ref[...] - mean * scale

        # ---- pass 1: one FMA + ReLU per element, lane-dense store.
        @pl.when(p == 1)
        def _normalize():
            o_ref[...] = jnp.maximum(y * scale_ref[...] + shift_ref[...], 0.0)

    return kernel


def visual_layer(x, weight, bias, gamma, beta, *, stride=2):
    """x: [N, C, H, W] f32 (NCHW). weight: [OC, C, 3, 3]. Returns [N, OC, OH, OW].

    `bias` is accepted for API parity but unused: a per-channel conv bias is
    exactly cancelled by the training-mode BatchNorm mean subtraction.
    """
    del bias
    N, C, H, W = x.shape
    OC, Cw, KH, KW = weight.shape
    assert Cw == C and KH == 3 and KW == 3
    assert stride == 2 and H % 2 == 0 and W % 2 == 0, "specialized to k=3, s=2, even H/W"
    OH = (H - KH) // stride + 1
    OW = (W - KW) // stride + 1
    HH, WH = H // 2, W // 2
    OCP = ((OC + 127) // 128) * 128          # lane-dense channel padding

    # Phase-decomposed NHWC input (same number of bytes as x — no im2col blowup):
    #   xp[n, (ph*2+pw)*HH + i, j, c] == x[n, 2*i + ph, 2*j + pw, c]
    x_nhwc = jnp.transpose(x, (0, 2, 3, 1)).astype(jnp.float32)          # [N, H, W, C]
    xp = x_nhwc.reshape(N, HH, 2, WH, 2, C).transpose(0, 2, 4, 1, 3, 5)  # [N,2,2,HH,WH,C]
    xp = xp.reshape(N, 4 * HH, WH, C)

    # Weights -> [KH, KW, C, OCP]; gamma/beta -> [1, OCP]; zero-pad the channel axis.
    w_t = jnp.transpose(weight.astype(jnp.float32), (2, 3, 1, 0))        # [KH, KW, C, OC]
    w_t = jnp.pad(w_t, ((0, 0), (0, 0), (0, 0), (0, OCP - OC)))
    g2 = jnp.pad(gamma.astype(jnp.float32), (0, OCP - OC)).reshape(1, OCP)
    b2 = jnp.pad(beta.astype(jnp.float32), (0, OCP - OC)).reshape(1, OCP)

    kernel = _make_kernel(N=N, C=C, KH=KH, KW=KW, OH=OH, OW=OW, OCP=OCP, HH=HH)

    out_padded = pl.pallas_call(
        kernel,
        out_shape=jax.ShapeDtypeStruct((N, OH, OW, OCP), jnp.float32),
        grid_spec=pltpu.PrefetchScalarGridSpec(
            num_scalar_prefetch=0,
            grid=(2, N),                      # (pass, batch element)
            in_specs=[
                pl.BlockSpec((None, 4 * HH, WH, C), lambda p, n: (n, 0, 0, 0)),
                pl.BlockSpec((KH, KW, C, OCP), lambda p, n: (0, 0, 0, 0)),
                pl.BlockSpec((1, OCP), lambda p, n: (0, 0)),
                pl.BlockSpec((1, OCP), lambda p, n: (0, 0)),
            ],
            # Pass 0 parks every step on block 0 (it is fully overwritten by
            # step (1, 0) before its first writeback), pass 1 writes block n:
            # each output block hits HBM exactly once, with final data.
            out_specs=pl.BlockSpec((None, OH, OW, OCP),
                                   lambda p, n: (n * p, 0, 0, 0)),
            scratch_shapes=[pltpu.VMEM((1, OCP), jnp.float32)] * 4,
        ),
        compiler_params=pltpu.CompilerParams(
            # Batch axis carries the stats scratch across steps -> must stay
            # sequential ("arbitrary"); a parallel split would give partial stats.
            dimension_semantics=("arbitrary", "arbitrary"),
            vmem_limit_bytes=32 * 1024 * 1024,
        ),
    )(xp, w_t, g2, b2)

    # Strip channel padding, back to NCHW.
    return jnp.transpose(out_padded[:, :, :, :OC], (0, 3, 1, 2))


def _reference(x, weight, bias, gamma, beta, stride):
    """Pure-JAX reference (im2col matmul + training-mode BN + ReLU)."""
    N, C, H, W = x.shape
    OC, _, KH, KW = weight.shape
    OH = (H - KH) // stride + 1
    OW = (W - KW) // stride + 1
    cols = []
    for kh in range(KH):
        for kw in range(KW):
            cols.append(x[:, :, kh:kh + stride * (OH - 1) + 1:stride,
                              kw:kw + stride * (OW - 1) + 1:stride])
    patches = (jnp.stack(cols, axis=0).reshape(KH, KW, N, C, OH, OW)
               .transpose(2, 4, 5, 3, 0, 1).reshape(N * OH * OW, C * KH * KW))
    w2 = weight.reshape(OC, -1).T
    y = jnp.dot(patches, w2, precision=jax.lax.Precision.HIGHEST) + bias[None, :]
    mean = jnp.mean(y, axis=0, keepdims=True)
    var = jnp.mean((y - mean) ** 2, axis=0, keepdims=True)
    y_hat = (y - mean) * jax.lax.rsqrt(var + EPS)
    out = jnp.maximum(gamma[None, :] * y_hat + beta[None, :], 0.0)
    return out.reshape(N, OH, OW, OC).transpose(0, 3, 1, 2)


if __name__ == "__main__":
    key = jax.random.PRNGKey(0)
    k_x, k_w, k_b = jax.random.split(key, 3)

    # small shapes consistent with the module: batch=2, in_channels=4, 16x16 spatial
    N, C, H, W = 2, 4, 16, 16
    OC, KH, KW, STRIDE = 20, 3, 3, 2

    x = jax.random.normal(k_x, (N, C, H, W), dtype=jnp.float32)

    fan_in = C * KH * KW
    bound = 1.0 / (fan_in ** 0.5)
    weight = jax.random.uniform(k_w, (OC, C, KH, KW), minval=-bound, maxval=bound,
                                dtype=jnp.float32)
    bias = jax.random.uniform(k_b, (OC,), minval=-bound, maxval=bound, dtype=jnp.float32)
    gamma = jnp.ones((OC,), dtype=jnp.float32)
    beta = jnp.zeros((OC,), dtype=jnp.float32)

    out = visual_layer(x, weight, bias, gamma, beta, stride=STRIDE)
    jax.block_until_ready(out)

    # sanity: shape (16-3)//2+1 = 7, non-negativity, and match vs pure-JAX reference
    assert out.shape == (N, OC, 7, 7), out.shape
    assert bool(jnp.all(out >= 0.0))
    ref = _reference(x, weight, bias, gamma, beta, STRIDE)
    assert bool(jnp.allclose(out, ref, atol=1e-3, rtol=1e-3)), \
        float(jnp.max(jnp.abs(out - ref)))

    print("KERNEL_OK")
</pallas_src>

<mosaic_0001>
module attributes {stable_mosaic.version = 11 : i64} {
  func.func @kernel(%arg0: i32, %arg1: i32, %arg2: memref<1x32x8x4xf32, #tpu.memory_space<vmem>>, %arg3: memref<3x3x4x128xf32, #tpu.memory_space<vmem>>, %arg4: memref<1x128xf32, #tpu.memory_space<vmem>>, %arg5: memref<1x128xf32, #tpu.memory_space<vmem>>, %arg6: memref<1x7x7x128xf32, #tpu.memory_space<vmem>>, %arg7: memref<1x128xf32, #tpu.memory_space<vmem>>, %arg8: memref<1x128xf32, #tpu.memory_space<vmem>>, %arg9: memref<1x128xf32, #tpu.memory_space<vmem>>, %arg10: memref<1x128xf32, #tpu.memory_space<vmem>>) attributes {dimension_semantics = [#tpu.dimension_semantics<arbitrary>, #tpu.dimension_semantics<arbitrary>], iteration_bounds = array<i64: 2, 2>, scalar_prefetch = 0 : i64, scratch_operands = 4 : i64, tpu.core_type = #tpu.core_type<tc>, window_params = [{transform_indices = @transform_0, window_bounds = array<i64: 1, 32, 8, 4>}, {pipeline_mode = #tpu.pipeline_mode<synchronous>, transform_indices = @transform_1, window_bounds = array<i64: 3, 3, 4, 128>}, {pipeline_mode = #tpu.pipeline_mode<synchronous>, transform_indices = @transform_2, window_bounds = array<i64: 1, 128>}, {pipeline_mode = #tpu.pipeline_mode<synchronous>, transform_indices = @transform_3, window_bounds = array<i64: 1, 128>}, {transform_indices = @transform_4, window_bounds = array<i64: 1, 7, 7, 128>}]} {
    %cst = arith.constant 0.000000e+00 : f32
    %0 = vector.broadcast %cst : f32 to vector<7x7x128xf32>
    %c0 = arith.constant 0 : index
    %c0_0 = arith.constant 0 : index
    %c0_1 = arith.constant 0 : index
    %c0_2 = arith.constant 0 : index
    %1 = vector.load %arg2[%c0, %c0_0, %c0_1, %c0_2] : memref<1x32x8x4xf32, #tpu.memory_space<vmem>>, vector<1x7x7x4xf32>
    %2 = vector.shape_cast %1 : vector<1x7x7x4xf32> to vector<7x7x4xf32>
    %3 = vector.extract_strided_slice %2 {offsets = [0, 0, 0], sizes = [7, 7, 1], strides = [1, 1, 1]} : vector<7x7x4xf32> to vector<7x7x1xf32>
    %c0_3 = arith.constant 0 : index
    %c0_4 = arith.constant 0 : index
    %c0_5 = arith.constant 0 : index
    %c0_6 = arith.constant 0 : index
    %4 = vector.load %arg3[%c0_3, %c0_4, %c0_5, %c0_6] : memref<3x3x4x128xf32, #tpu.memory_space<vmem>>, vector<1x1x1x128xf32>
    %5 = vector.shape_cast %4 : vector<1x1x1x128xf32> to vector<1x128xf32>
    %6 = vector.shape_cast %5 : vector<1x128xf32> to vector<1x1x128xf32>
    %7 = vector.broadcast %3 : vector<7x7x1xf32> to vector<7x7x128xf32>
    %8 = vector.broadcast %6 : vector<1x1x128xf32> to vector<7x7x128xf32>
    %9 = arith.mulf %7, %8 : vector<7x7x128xf32>
    %10 = arith.addf %0, %9 : vector<7x7x128xf32>
    %11 = vector.extract_strided_slice %2 {offsets = [0, 0, 1], sizes = [7, 7, 1], strides = [1, 1, 1]} : vector<7x7x4xf32> to vector<7x7x1xf32>
    %c0_7 = arith.constant 0 : index
    %c0_8 = arith.constant 0 : index
    %c1 = arith.constant 1 : index
    %c0_9 = arith.constant 0 : index
    %12 = vector.load %arg3[%c0_7, %c0_8, %c1, %c0_9] : memref<3x3x4x128xf32, #tpu.memory_space<vmem>>, vector<1x1x1x128xf32>
    %13 = vector.shape_cast %12 : vector<1x1x1x128xf32> to vector<1x128xf32>
    %14 = vector.shape_cast %13 : vector<1x128xf32> to vector<1x1x128xf32>
    %15 = vector.broadcast %11 : vector<7x7x1xf32> to vector<7x7x128xf32>
    %16 = vector.broadcast %14 : vector<1x1x128xf32> to vector<7x7x128xf32>
    %17 = arith.mulf %15, %16 : vector<7x7x128xf32>
    %18 = arith.addf %10, %17 : vector<7x7x128xf32>
    %19 = vector.extract_strided_slice %2 {offsets = [0, 0, 2], sizes = [7, 7, 1], strides = [1, 1, 1]} : vector<7x7x4xf32> to vector<7x7x1xf32>
    %c0_10 = arith.constant 0 : index
    %c0_11 = arith.constant 0 : index
    %c2 = arith.constant 2 : index
    %c0_12 = arith.constant 0 : index
    %20 = vector.load %arg3[%c0_10, %c0_11, %c2, %c0_12] : memref<3x3x4x128xf32, #tpu.memory_space<vmem>>, vector<1x1x1x128xf32>
    %21 = vector.shape_cast %20 : vector<1x1x1x128xf32> to vector<1x128xf32>
    %22 = vector.shape_cast %21 : vector<1x128xf32> to vector<1x1x128xf32>
    %23 = vector.broadcast %19 : vector<7x7x1xf32> to vector<7x7x128xf32>
    %24 = vector.broadcast %22 : vector<1x1x128xf32> to vector<7x7x128xf32>
    %25 = arith.mulf %23, %24 : vector<7x7x128xf32>
    %26 = arith.addf %18, %25 : vector<7x7x128xf32>
    %27 = vector.extract_strided_slice %2 {offsets = [0, 0, 3], sizes = [7, 7, 1], strides = [1, 1, 1]} : vector<7x7x4xf32> to vector<7x7x1xf32>
    %c0_13 = arith.constant 0 : index
    %c0_14 = arith.constant 0 : index
    %c3 = arith.constant 3 : index
    %c0_15 = arith.constant 0 : index
    %28 = vector.load %arg3[%c0_13, %c0_14, %c3, %c0_15] : memref<3x3x4x128xf32, #tpu.memory_space<vmem>>, vector<1x1x1x128xf32>
    %29 = vector.shape_cast %28 : vector<1x1x1x128xf32> to vector<1x128xf32>
    %30 = vector.shape_cast %29 : vector<1x128xf32> to vector<1x1x128xf32>
    %31 = vector.broadcast %27 : vector<7x7x1xf32> to vector<7x7x128xf32>
    %32 = vector.broadcast %30 : vector<1x1x128xf32> to vector<7x7x128xf32>
    %33 = arith.mulf %31, %32 : vector<7x7x128xf32>
    %34 = arith.addf %26, %33 : vector<7x7x128xf32>
    %c0_16 = arith.constant 0 : index
    %c8 = arith.constant 8 : index
    %c0_17 = arith.constant 0 : index
    %c0_18 = arith.constant 0 : index
    %35 = vector.load %arg2[%c0_16, %c8, %c0_17, %c0_18] : memref<1x32x8x4xf32, #tpu.memory_space<vmem>>, vector<1x7x7x4xf32>
    %36 = vector.shape_cast %35 : vector<1x7x7x4xf32> to vector<7x7x4xf32>
    %37 = vector.extract_strided_slice %36 {offsets = [0, 0, 0], sizes = [7, 7, 1], strides = [1, 1, 1]} : vector<7x7x4xf32> to vector<7x7x1xf32>
    %c0_19 = arith.constant 0 : index
    %c1_20 = arith.constant 1 : index
    %c0_21 = arith.constant 0 : index
    %c0_22 = arith.constant 0 : index
    %38 = vector.load %arg3[%c0_19, %c1_20, %c0_21, %c0_22] : memref<3x3x4x128xf32, #tpu.memory_space<vmem>>, vector<1x1x1x128xf32>
    %39 = vector.shape_cast %38 : vector<1x1x1x128xf32> to vector<1x128xf32>
    %40 = vector.shape_cast %39 : vector<1x128xf32> to vector<1x1x128xf32>
    %41 = vector.broadcast %37 : vector<7x7x1xf32> to vector<7x7x128xf32>
    %42 = vector.broadcast %40 : vector<1x1x128xf32> to vector<7x7x128xf32>
    %43 = arith.mulf %41, %42 : vector<7x7x128xf32>
    %44 = arith.addf %34, %43 : vector<7x7x128xf32>
    %45 = vector.extract_strided_slice %36 {offsets = [0, 0, 1], sizes = [7, 7, 1], strides = [1, 1, 1]} : vector<7x7x4xf32> to vector<7x7x1xf32>
    %c0_23 = arith.constant 0 : index
    %c1_24 = arith.constant 1 : index
    %c1_25 = arith.constant 1 : index
    %c0_26 = arith.constant 0 : index
    %46 = vector.load %arg3[%c0_23, %c1_24, %c1_25, %c0_26] : memref<3x3x4x128xf32, #tpu.memory_space<vmem>>, vector<1x1x1x128xf32>
    %47 = vector.shape_cast %46 : vector<1x1x1x128xf32> to vector<1x128xf32>
    %48 = vector.shape_cast %47 : vector<1x128xf32> to vector<1x1x128xf32>
    %49 = vector.broadcast %45 : vector<7x7x1xf32> to vector<7x7x128xf32>
    %50 = vector.broadcast %48 : vector<1x1x128xf32> to vector<7x7x128xf32>
    %51 = arith.mulf %49, %50 : vector<7x7x128xf32>
    %52 = arith.addf %44, %51 : vector<7x7x128xf32>
    %53 = vector.extract_strided_slice %36 {offsets = [0, 0, 2], sizes = [7, 7, 1], strides = [1, 1, 1]} : vector<7x7x4xf32> to vector<7x7x1xf32>
    %c0_27 = arith.constant 0 : index
    %c1_28 = arith.constant 1 : index
    %c2_29 = arith.constant 2 : index
    %c0_30 = arith.constant 0 : index
    %54 = vector.load %arg3[%c0_27, %c1_28, %c2_29, %c0_30] : memref<3x3x4x128xf32, #tpu.memory_space<vmem>>, vector<1x1x1x128xf32>
    %55 = vector.shape_cast %54 : vector<1x1x1x128xf32> to vector<1x128xf32>
    %56 = vector.shape_cast %55 : vector<1x128xf32> to vector<1x1x128xf32>
    %57 = vector.broadcast %53 : vector<7x7x1xf32> to vector<7x7x128xf32>
    %58 = vector.broadcast %56 : vector<1x1x128xf32> to vector<7x7x128xf32>
    %59 = arith.mulf %57, %58 : vector<7x7x128xf32>
    %60 = arith.addf %52, %59 : vector<7x7x128xf32>
    %61 = vector.extract_strided_slice %36 {offsets = [0, 0, 3], sizes = [7, 7, 1], strides = [1, 1, 1]} : vector<7x7x4xf32> to vector<7x7x1xf32>
    %c0_31 = arith.constant 0 : index
    %c1_32 = arith.constant 1 : index
    %c3_33 = arith.constant 3 : index
    %c0_34 = arith.constant 0 : index
    %62 = vector.load %arg3[%c0_31, %c1_32, %c3_33, %c0_34] : memref<3x3x4x128xf32, #tpu.memory_space<vmem>>, vector<1x1x1x128xf32>
    %63 = vector.shape_cast %62 : vector<1x1x1x128xf32> to vector<1x128xf32>
    %64 = vector.shape_cast %63 : vector<1x128xf32> to vector<1x1x128xf32>
    %65 = vector.broadcast %61 : vector<7x7x1xf32> to vector<7x7x128xf32>
    %66 = vector.broadcast %64 : vector<1x1x128xf32> to vector<7x7x128xf32>
    %67 = arith.mulf %65, %66 : vector<7x7x128xf32>
    %68 = arith.addf %60, %67 : vector<7x7x128xf32>
    %c0_35 = arith.constant 0 : index
    %c0_36 = arith.constant 0 : index
    %c1_37 = arith.constant 1 : index
    %c0_38 = arith.constant 0 : index
    %69 = vector.load %arg2[%c0_35, %c0_36, %c1_37, %c0_38] : memref<1x32x8x4xf32, #tpu.memory_space<vmem>>, vector<1x7x7x4xf32>
    %70 = vector.shape_cast %69 : vector<1x7x7x4xf32> to vector<7x7x4xf32>
    %71 = vector.extract_strided_slice %70 {offsets = [0, 0, 0], sizes = [7, 7, 1], strides = [1, 1, 1]} : vector<7x7x4xf32> to vector<7x7x1xf32>
    %c0_39 = arith.constant 0 : index
    %c2_40 = arith.constant 2 : index
    %c0_41 = arith.constant 0 : index
    %c0_42 = arith.constant 0 : index
    %72 = vector.load %arg3[%c0_39, %c2_40, %c0_41, %c0_42] : memref<3x3x4x128xf32, #tpu.memory_space<vmem>>, vector<1x1x1x128xf32>
    %73 = vector.shape_cast %72 : vector<1x1x1x128xf32> to vector<1x128xf32>
    %74 = vector.shape_cast %73 : vector<1x128xf32> to vector<1x1x128xf32>
    %75 = vector.broadcast %71 : vector<7x7x1xf32> to vector<7x7x128xf32>
    %76 = vector.broadcast %74 : vector<1x1x128xf32> to vector<7x7x128xf32>
    %77 = arith.mulf %75, %76 : vector<7x7x128xf32>
    %78 = arith.addf %68, %77 : vector<7x7x128xf32>
    %79 = vector.extract_strided_slice %70 {offsets = [0, 0, 1], sizes = [7, 7, 1], strides = [1, 1, 1]} : vector<7x7x4xf32> to vector<7x7x1xf32>
    %c0_43 = arith.constant 0 : index
    %c2_44 = arith.constant 2 : index
    %c1_45 = arith.constant 1 : index
    %c0_46 = arith.constant 0 : index
    %80 = vector.load %arg3[%c0_43, %c2_44, %c1_45, %c0_46] : memref<3x3x4x128xf32, #tpu.memory_space<vmem>>, vector<1x1x1x128xf32>
    %81 = vector.shape_cast %80 : vector<1x1x1x128xf32> to vector<1x128xf32>
    %82 = vector.shape_cast %81 : vector<1x128xf32> to vector<1x1x128xf32>
    %83 = vector.broadcast %79 : vector<7x7x1xf32> to vector<7x7x128xf32>
    %84 = vector.broadcast %82 : vector<1x1x128xf32> to vector<7x7x128xf32>
    %85 = arith.mulf %83, %84 : vector<7x7x128xf32>
    %86 = arith.addf %78, %85 : vector<7x7x128xf32>
    %87 = vector.extract_strided_slice %70 {offsets = [0, 0, 2], sizes = [7, 7, 1], strides = [1, 1, 1]} : vector<7x7x4xf32> to vector<7x7x1xf32>
    %c0_47 = arith.constant 0 : index
    %c2_48 = arith.constant 2 : index
    %c2_49 = arith.constant 2 : index
    %c0_50 = arith.constant 0 : index
    %88 = vector.load %arg3[%c0_47, %c2_48, %c2_49, %c0_50] : memref<3x3x4x128xf32, #tpu.memory_space<vmem>>, vector<1x1x1x128xf32>
    %89 = vector.shape_cast %88 : vector<1x1x1x128xf32> to vector<1x128xf32>
    %90 = vector.shape_cast %89 : vector<1x128xf32> to vector<1x1x128xf32>
    %91 = vector.broadcast %87 : vector<7x7x1xf32> to vector<7x7x128xf32>
    %92 = vector.broadcast %90 : vector<1x1x128xf32> to vector<7x7x128xf32>
    %93 = arith.mulf %91, %92 : vector<7x7x128xf32>
    %94 = arith.addf %86, %93 : vector<7x7x128xf32>
    %95 = vector.extract_strided_slice %70 {offsets = [0, 0, 3], sizes = [7, 7, 1], strides = [1, 1, 1]} : vector<7x7x4xf32> to vector<7x7x1xf32>
    %c0_51 = arith.constant 0 : index
    %c2_52 = arith.constant 2 : index
    %c3_53 = arith.constant 3 : index
    %c0_54 = arith.constant 0 : index
    %96 = vector.load %arg3[%c0_51, %c2_52, %c3_53, %c0_54] : memref<3x3x4x128xf32, #tpu.memory_space<vmem>>, vector<1x1x1x128xf32>
    %97 = vector.shape_cast %96 : vector<1x1x1x128xf32> to vector<1x128xf32>
    %98 = vector.shape_cast %97 : vector<1x128xf32> to vector<1x1x128xf32>
    %99 = vector.broadcast %95 : vector<7x7x1xf32> to vector<7x7x128xf32>
    %100 = vector.broadcast %98 : vector<1x1x128xf32> to vector<7x7x128xf32>
    %101 = arith.mulf %99, %100 : vector<7x7x128xf32>
    %102 = arith.addf %94, %101 : vector<7x7x128xf32>
    %c0_55 = arith.constant 0 : index
    %c16 = arith.constant 16 : index
    %c0_56 = arith.constant 0 : index
    %c0_57 = arith.constant 0 : index
    %103 = vector.load %arg2[%c0_55, %c16, %c0_56, %c0_57] : memref<1x32x8x4xf32, #tpu.memory_space<vmem>>, vector<1x7x7x4xf32>
    %104 = vector.shape_cast %103 : vector<1x7x7x4xf32> to vector<7x7x4xf32>
    %105 = vector.extract_strided_slice %104 {offsets = [0, 0, 0], sizes = [7, 7, 1], strides = [1, 1, 1]} : vector<7x7x4xf32> to vector<7x7x1xf32>
    %c1_58 = arith.constant 1 : index
    %c0_59 = arith.constant 0 : index
    %c0_60 = arith.constant 0 : index
    %c0_61 = arith.constant 0 : index
    %106 = vector.load %arg3[%c1_58, %c0_59, %c0_60, %c0_61] : memref<3x3x4x128xf32, #tpu.memory_space<vmem>>, vector<1x1x1x128xf32>
    %107 = vector.shape_cast %106 : vector<1x1x1x128xf32> to vector<1x128xf32>
    %108 = vector.shape_cast %107 : vector<1x128xf32> to vector<1x1x128xf32>
    %109 = vector.broadcast %105 : vector<7x7x1xf32> to vector<7x7x128xf32>
    %110 = vector.broadcast %108 : vector<1x1x128xf32> to vector<7x7x128xf32>
    %111 = arith.mulf %109, %110 : vector<7x7x128xf32>
    %112 = arith.addf %102, %111 : vector<7x7x128xf32>
    %113 = vector.extract_strided_slice %104 {offsets = [0, 0, 1], sizes = [7, 7, 1], strides = [1, 1, 1]} : vector<7x7x4xf32> to vector<7x7x1xf32>
    %c1_62 = arith.constant 1 : index
    %c0_63 = arith.constant 0 : index
    %c1_64 = arith.constant 1 : index
    %c0_65 = arith.constant 0 : index
    %114 = vector.load %arg3[%c1_62, %c0_63, %c1_64, %c0_65] : memref<3x3x4x128xf32, #tpu.memory_space<vmem>>, vector<1x1x1x128xf32>
    %115 = vector.shape_cast %114 : vector<1x1x1x128xf32> to vector<1x128xf32>
    %116 = vector.shape_cast %115 : vector<1x128xf32> to vector<1x1x128xf32>
    %117 = vector.broadcast %113 : vector<7x7x1xf32> to vector<7x7x128xf32>
    %118 = vector.broadcast %116 : vector<1x1x128xf32> to vector<7x7x128xf32>
    %119 = arith.mulf %117, %118 : vector<7x7x128xf32>
    %120 = arith.addf %112, %119 : vector<7x7x128xf32>
    %121 = vector.extract_strided_slice %104 {offsets = [0, 0, 2], sizes = [7, 7, 1], strides = [1, 1, 1]} : vector<7x7x4xf32> to vector<7x7x1xf32>
    %c1_66 = arith.constant 1 : index
    %c0_67 = arith.constant 0 : index
    %c2_68 = arith.constant 2 : index
    %c0_69 = arith.constant 0 : index
    %122 = vector.load %arg3[%c1_66, %c0_67, %c2_68, %c0_69] : memref<3x3x4x128xf32, #tpu.memory_space<vmem>>, vector<1x1x1x128xf32>
    %123 = vector.shape_cast %122 : vector<1x1x1x128xf32> to vector<1x128xf32>
    %124 = vector.shape_cast %123 : vector<1x128xf32> to vector<1x1x128xf32>
    %125 = vector.broadcast %121 : vector<7x7x1xf32> to vector<7x7x128xf32>
    %126 = vector.broadcast %124 : vector<1x1x128xf32> to vector<7x7x128xf32>
    %127 = arith.mulf %125, %126 : vector<7x7x128xf32>
    %128 = arith.addf %120, %127 : vector<7x7x128xf32>
    %129 = vector.extract_strided_slice %104 {offsets = [0, 0, 3], sizes = [7, 7, 1], strides = [1, 1, 1]} : vector<7x7x4xf32> to vector<7x7x1xf32>
    %c1_70 = arith.constant 1 : index
    %c0_71 = arith.constant 0 : index
    %c3_72 = arith.constant 3 : index
    %c0_73 = arith.constant 0 : index
    %130 = vector.load %arg3[%c1_70, %c0_71, %c3_72, %c0_73] : memref<3x3x4x128xf32, #tpu.memory_space<vmem>>, vector<1x1x1x128xf32>
    %131 = vector.shape_cast %130 : vector<1x1x1x128xf32> to vector<1x128xf32>
    %132 = vector.shape_cast %131 : vector<1x128xf32> to vector<1x1x128xf32>
    %133 = vector.broadcast %129 : vector<7x7x1xf32> to vector<7x7x128xf32>
    %134 = vector.broadcast %132 : vector<1x1x128xf32> to vector<7x7x128xf32>
    %135 = arith.mulf %133, %134 : vector<7x7x128xf32>
    %136 = arith.addf %128, %135 : vector<7x7x128xf32>
    %c0_74 = arith.constant 0 : index
    %c24 = arith.constant 24 : index
    %c0_75 = arith.constant 0 : index
    %c0_76 = arith.constant 0 : index
    %137 = vector.load %arg2[%c0_74, %c24, %c0_75, %c0_76] : memref<1x32x8x4xf32, #tpu.memory_space<vmem>>, vector<1x7x7x4xf32>
    %138 = vector.shape_cast %137 : vector<1x7x7x4xf32> to vector<7x7x4xf32>
    %139 = vector.extract_strided_slice %138 {offsets = [0, 0, 0], sizes = [7, 7, 1], strides = [1, 1, 1]} : vector<7x7x4xf32> to vector<7x7x1xf32>
    %c1_77 = arith.constant 1 : index
    %c1_78 = arith.constant 1 : index
    %c0_79 = arith.constant 0 : index
    %c0_80 = arith.constant 0 : index
    %140 = vector.load %arg3[%c1_77, %c1_78, %c0_79, %c0_80] : memref<3x3x4x128xf32, #tpu.memory_space<vmem>>, vector<1x1x1x128xf32>
    %141 = vector.shape_cast %140 : vector<1x1x1x128xf32> to vector<1x128xf32>
    %142 = vector.shape_cast %141 : vector<1x128xf32> to vector<1x1x128xf32>
    %143 = vector.broadcast %139 : vector<7x7x1xf32> to vector<7x7x128xf32>
    %144 = vector.broadcast %142 : vector<1x1x128xf32> to vector<7x7x128xf32>
    %145 = arith.mulf %143, %144 : vector<7x7x128xf32>
    %146 = arith.addf %136, %145 : vector<7x7x128xf32>
    %147 = vector.extract_strided_slice %138 {offsets = [0, 0, 1], sizes = [7, 7, 1], strides = [1, 1, 1]} : vector<7x7x4xf32> to vector<7x7x1xf32>
    %c1_81 = arith.constant 1 : index
    %c1_82 = arith.constant 1 : index
    %c1_83 = arith.constant 1 : index
    %c0_84 = arith.constant 0 : index
    %148 = vector.load %arg3[%c1_81, %c1_82, %c1_83, %c0_84] : memref<3x3x4x128xf32, #tpu.memory_space<vmem>>, vector<1x1x1x128xf32>
    %149 = vector.shape_cast %148 : vector<1x1x1x128xf32> to vector<1x128xf32>
    %150 = vector.shape_cast %149 : vector<1x128xf32> to vector<1x1x128xf32>
    %151 = vector.broadcast %147 : vector<7x7x1xf32> to vector<7x7x128xf32>
    %152 = vector.broadcast %150 : vector<1x1x128xf32> to vector<7x7x128xf32>
    %153 = arith.mulf %151, %152 : vector<7x7x128xf32>
    %154 = arith.addf %146, %153 : vector<7x7x128xf32>
    %155 = vector.extract_strided_slice %138 {offsets = [0, 0, 2], sizes = [7, 7, 1], strides = [1, 1, 1]} : vector<7x7x4xf32> to vector<7x7x1xf32>
    %c1_85 = arith.constant 1 : index
    %c1_86 = arith.constant 1 : index
    %c2_87 = arith.constant 2 : index
    %c0_88 = arith.constant 0 : index
    %156 = vector.load %arg3[%c1_85, %c1_86, %c2_87, %c0_88] : memref<3x3x4x128xf32, #tpu.memory_space<vmem>>, vector<1x1x1x128xf32>
    %157 = vector.shape_cast %156 : vector<1x1x1x128xf32> to vector<1x128xf32>
    %158 = vector.shape_cast %157 : vector<1x128xf32> to vector<1x1x128xf32>
    %159 = vector.broadcast %155 : vector<7x7x1xf32> to vector<7x7x128xf32>
    %160 = vector.broadcast %158 : vector<1x1x128xf32> to vector<7x7x128xf32>
    %161 = arith.mulf %159, %160 : vector<7x7x128xf32>
    %162 = arith.addf %154, %161 : vector<7x7x128xf32>
    %163 = vector.extract_strided_slice %138 {offsets = [0, 0, 3], sizes = [7, 7, 1], strides = [1, 1, 1]} : vector<7x7x4xf32> to vector<7x7x1xf32>
    %c1_89 = arith.constant 1 : index
    %c1_90 = arith.constant 1 : index
    %c3_91 = arith.constant 3 : index
    %c0_92 = arith.constant 0 : index
    %164 = vector.load %arg3[%c1_89, %c1_90, %c3_91, %c0_92] : memref<3x3x4x128xf32, #tpu.memory_space<vmem>>, vector<1x1x1x128xf32>
    %165 = vector.shape_cast %164 : vector<1x1x1x128xf32> to vector<1x128xf32>
    %166 = vector.shape_cast %165 : vector<1x128xf32> to vector<1x1x128xf32>
    %167 = vector.broadcast %163 : vector<7x7x1xf32> to vector<7x7x128xf32>
    %168 = vector.broadcast %166 : vector<1x1x128xf32> to vector<7x7x128xf32>
    %169 = arith.mulf %167, %168 : vector<7x7x128xf32>
    %170 = arith.addf %162, %169 : vector<7x7x128xf32>
    %c0_93 = arith.constant 0 : index
    %c16_94 = arith.constant 16 : index
    %c1_95 = arith.constant 1 : index
    %c0_96 = arith.constant 0 : index
    %171 = vector.load %arg2[%c0_93, %c16_94, %c1_95, %c0_96] : memref<1x32x8x4xf32, #tpu.memory_space<vmem>>, vector<1x7x7x4xf32>
    %172 = vector.shape_cast %171 : vector<1x7x7x4xf32> to vector<7x7x4xf32>
    %173 = vector.extract_strided_slice %172 {offsets = [0, 0, 0], sizes = [7, 7, 1], strides = [1, 1, 1]} : vector<7x7x4xf32> to vector<7x7x1xf32>
    %c1_97 = arith.constant 1 : index
    %c2_98 = arith.constant 2 : index
    %c0_99 = arith.constant 0 : index
    %c0_100 = arith.constant 0 : index
    %174 = vector.load %arg3[%c1_97, %c2_98, %c0_99, %c0_100] : memref<3x3x4x128xf32, #tpu.memory_space<vmem>>, vector<1x1x1x128xf32>
    %175 = vector.shape_cast %174 : vector<1x1x1x128xf32> to vector<1x128xf32>
    %176 = vector.shape_cast %175 : vector<1x128xf32> to vector<1x1x128xf32>
    %177 = vector.broadcast %173 : vector<7x7x1xf32> to vector<7x7x128xf32>
    %178 = vector.broadcast %176 : vector<1x1x128xf32> to vector<7x7x128xf32>
    %179 = arith.mulf %177, %178 : vector<7x7x128xf32>
    %180 = arith.addf %170, %179 : vector<7x7x128xf32>
    %181 = vector.extract_strided_slice %172 {offsets = [0, 0, 1], sizes = [7, 7, 1], strides = [1, 1, 1]} : vector<7x7x4xf32> to vector<7x7x1xf32>
    %c1_101 = arith.constant 1 : index
    %c2_102 = arith.constant 2 : index
    %c1_103 = arith.constant 1 : index
    %c0_104 = arith.constant 0 : index
    %182 = vector.load %arg3[%c1_101, %c2_102, %c1_103, %c0_104] : memref<3x3x4x128xf32, #tpu.memory_space<vmem>>, vector<1x1x1x128xf32>
    %183 = vector.shape_cast %182 : vector<1x1x1x128xf32> to vector<1x128xf32>
    %184 = vector.shape_cast %183 : vector<1x128xf32> to vector<1x1x128xf32>
    %185 = vector.broadcast %181 : vector<7x7x1xf32> to vector<7x7x128xf32>
    %186 = vector.broadcast %184 : vector<1x1x128xf32> to vector<7x7x128xf32>
    %187 = arith.mulf %185, %186 : vector<7x7x128xf32>
    %188 = arith.addf %180, %187 : vector<7x7x128xf32>
    %189 = vector.extract_strided_slice %172 {offsets = [0, 0, 2], sizes = [7, 7, 1], strides = [1, 1, 1]} : vector<7x7x4xf32> to vector<7x7x1xf32>
    %c1_105 = arith.constant 1 : index
    %c2_106 = arith.constant 2 : index
    %c2_107 = arith.constant 2 : index
    %c0_108 = arith.constant 0 : index
    %190 = vector.load %arg3[%c1_105, %c2_106, %c2_107, %c0_108] : memref<3x3x4x128xf32, #tpu.memory_space<vmem>>, vector<1x1x1x128xf32>
    %191 = vector.shape_cast %190 : vector<1x1x1x128xf32> to vector<1x128xf32>
    %192 = vector.shape_cast %191 : vector<1x128xf32> to vector<1x1x128xf32>
    %193 = vector.broadcast %189 : vector<7x7x1xf32> to vector<7x7x128xf32>
    %194 = vector.broadcast %192 : vector<1x1x128xf32> to vector<7x7x128xf32>
    %195 = arith.mulf %193, %194 : vector<7x7x128xf32>
    %196 = arith.addf %188, %195 : vector<7x7x128xf32>
    %197 = vector.extract_strided_slice %172 {offsets = [0, 0, 3], sizes = [7, 7, 1], strides = [1, 1, 1]} : vector<7x7x4xf32> to vector<7x7x1xf32>
    %c1_109 = arith.constant 1 : index
    %c2_110 = arith.constant 2 : index
    %c3_111 = arith.constant 3 : index
    %c0_112 = arith.constant 0 : index
    %198 = vector.load %arg3[%c1_109, %c2_110, %c3_111, %c0_112] : memref<3x3x4x128xf32, #tpu.memory_space<vmem>>, vector<1x1x1x128xf32>
    %199 = vector.shape_cast %198 : vector<1x1x1x128xf32> to vector<1x128xf32>
    %200 = vector.shape_cast %199 : vector<1x128xf32> to vector<1x1x128xf32>
    %201 = vector.broadcast %197 : vector<7x7x1xf32> to vector<7x7x128xf32>
    %202 = vector.broadcast %200 : vector<1x1x128xf32> to vector<7x7x128xf32>
    %203 = arith.mulf %201, %202 : vector<7x7x128xf32>
    %204 = arith.addf %196, %203 : vector<7x7x128xf32>
    %c0_113 = arith.constant 0 : index
    %c1_114 = arith.constant 1 : index
    %c0_115 = arith.constant 0 : index
    %c0_116 = arith.constant 0 : index
    %205 = vector.load %arg2[%c0_113, %c1_114, %c0_115, %c0_116] : memref<1x32x8x4xf32, #tpu.memory_space<vmem>>, vector<1x7x7x4xf32>
    %206 = vector.shape_cast %205 : vector<1x7x7x4xf32> to vector<7x7x4xf32>
    %207 = vector.extract_strided_slice %206 {offsets = [0, 0, 0], sizes = [7, 7, 1], strides = [1, 1, 1]} : vector<7x7x4xf32> to vector<7x7x1xf32>
    %c2_117 = arith.constant 2 : index
    %c0_118 = arith.constant 0 : index
    %c0_119 = arith.constant 0 : index
    %c0_120 = arith.constant 0 : index
    %208 = vector.load %arg3[%c2_117, %c0_118, %c0_119, %c0_120] : memref<3x3x4x128xf32, #tpu.memory_space<vmem>>, vector<1x1x1x128xf32>
    %209 = vector.shape_cast %208 : vector<1x1x1x128xf32> to vector<1x128xf32>
    %210 = vector.shape_cast %209 : vector<1x128xf32> to vector<1x1x128xf32>
    %211 = vector.broadcast %207 : vector<7x7x1xf32> to vector<7x7x128xf32>
    %212 = vector.broadcast %210 : vector<1x1x128xf32> to vector<7x7x128xf32>
    %213 = arith.mulf %211, %212 : vector<7x7x128xf32>
    %214 = arith.addf %204, %213 : vector<7x7x128xf32>
    %215 = vector.extract_strided_slice %206 {offsets = [0, 0, 1], sizes = [7, 7, 1], strides = [1, 1, 1]} : vector<7x7x4xf32> to vector<7x7x1xf32>
    %c2_121 = arith.constant 2 : index
    %c0_122 = arith.constant 0 : index
    %c1_123 = arith.constant 1 : index
    %c0_124 = arith.constant 0 : index
    %216 = vector.load %arg3[%c2_121, %c0_122, %c1_123, %c0_124] : memref<3x3x4x128xf32, #tpu.memory_space<vmem>>, vector<1x1x1x128xf32>
    %217 = vector.shape_cast %216 : vector<1x1x1x128xf32> to vector<1x128xf32>
    %218 = vector.shape_cast %217 : vector<1x128xf32> to vector<1x1x128xf32>
    %219 = vector.broadcast %215 : vector<7x7x1xf32> to vector<7x7x128xf32>
    %220 = vector.broadcast %218 : vector<1x1x128xf32> to vector<7x7x128xf32>
    %221 = arith.mulf %219, %220 : vector<7x7x128xf32>
    %222 = arith.addf %214, %221 : vector<7x7x128xf32>
    %223 = vector.extract_strided_slice %206 {offsets = [0, 0, 2], sizes = [7, 7, 1], strides = [1, 1, 1]} : vector<7x7x4xf32> to vector<7x7x1xf32>
    %c2_125 = arith.constant 2 : index
    %c0_126 = arith.constant 0 : index
    %c2_127 = arith.constant 2 : index
    %c0_128 = arith.constant 0 : index
    %224 = vector.load %arg3[%c2_125, %c0_126, %c2_127, %c0_128] : memref<3x3x4x128xf32, #tpu.memory_space<vmem>>, vector<1x1x1x128xf32>
    %225 = vector.shape_cast %224 : vector<1x1x1x128xf32> to vector<1x128xf32>
    %226 = vector.shape_cast %225 : vector<1x128xf32> to vector<1x1x128xf32>
    %227 = vector.broadcast %223 : vector<7x7x1xf32> to vector<7x7x128xf32>
    %228 = vector.broadcast %226 : vector<1x1x128xf32> to vector<7x7x128xf32>
    %229 = arith.mulf %227, %228 : vector<7x7x128xf32>
    %230 = arith.addf %222, %229 : vector<7x7x128xf32>
    %231 = vector.extract_strided_slice %206 {offsets = [0, 0, 3], sizes = [7, 7, 1], strides = [1, 1, 1]} : vector<7x7x4xf32> to vector<7x7x1xf32>
    %c2_129 = arith.constant 2 : index
    %c0_130 = arith.constant 0 : index
    %c3_131 = arith.constant 3 : index
    %c0_132 = arith.constant 0 : index
    %232 = vector.load %arg3[%c2_129, %c0_130, %c3_131, %c0_132] : memref<3x3x4x128xf32, #tpu.memory_space<vmem>>, vector<1x1x1x128xf32>
    %233 = vector.shape_cast %232 : vector<1x1x1x128xf32> to vector<1x128xf32>
    %234 = vector.shape_cast %233 : vector<1x128xf32> to vector<1x1x128xf32>
    %235 = vector.broadcast %231 : vector<7x7x1xf32> to vector<7x7x128xf32>
    %236 = vector.broadcast %234 : vector<1x1x128xf32> to vector<7x7x128xf32>
    %237 = arith.mulf %235, %236 : vector<7x7x128xf32>
    %238 = arith.addf %230, %237 : vector<7x7x128xf32>
    %c0_133 = arith.constant 0 : index
    %c9 = arith.constant 9 : index
    %c0_134 = arith.constant 0 : index
    %c0_135 = arith.constant 0 : index
    %239 = vector.load %arg2[%c0_133, %c9, %c0_134, %c0_135] : memref<1x32x8x4xf32, #tpu.memory_space<vmem>>, vector<1x7x7x4xf32>
    %240 = vector.shape_cast %239 : vector<1x7x7x4xf32> to vector<7x7x4xf32>
    %241 = vector.extract_strided_slice %240 {offsets = [0, 0, 0], sizes = [7, 7, 1], strides = [1, 1, 1]} : vector<7x7x4xf32> to vector<7x7x1xf32>
    %c2_136 = arith.constant 2 : index
    %c1_137 = arith.constant 1 : index
    %c0_138 = arith.constant 0 : index
    %c0_139 = arith.constant 0 : index
    %242 = vector.load %arg3[%c2_136, %c1_137, %c0_138, %c0_139] : memref<3x3x4x128xf32, #tpu.memory_space<vmem>>, vector<1x1x1x128xf32>
    %243 = vector.shape_cast %242 : vector<1x1x1x128xf32> to vector<1x128xf32>
    %244 = vector.shape_cast %243 : vector<1x128xf32> to vector<1x1x128xf32>
    %245 = vector.broadcast %241 : vector<7x7x1xf32> to vector<7x7x128xf32>
    %246 = vector.broadcast %244 : vector<1x1x128xf32> to vector<7x7x128xf32>
    %247 = arith.mulf %245, %246 : vector<7x7x128xf32>
    %248 = arith.addf %238, %247 : vector<7x7x128xf32>
    %249 = vector.extract_strided_slice %240 {offsets = [0, 0, 1], sizes = [7, 7, 1], strides = [1, 1, 1]} : vector<7x7x4xf32> to vector<7x7x1xf32>
    %c2_140 = arith.constant 2 : index
    %c1_141 = arith.constant 1 : index
    %c1_142 = arith.constant 1 : index
    %c0_143 = arith.constant 0 : index
    %250 = vector.load %arg3[%c2_140, %c1_141, %c1_142, %c0_143] : memref<3x3x4x128xf32, #tpu.memory_space<vmem>>, vector<1x1x1x128xf32>
    %251 = vector.shape_cast %250 : vector<1x1x1x128xf32> to vector<1x128xf32>
    %252 = vector.shape_cast %251 : vector<1x128xf32> to vector<1x1x128xf32>
    %253 = vector.broadcast %249 : vector<7x7x1xf32> to vector<7x7x128xf32>
    %254 = vector.broadcast %252 : vector<1x1x128xf32> to vector<7x7x128xf32>
    %255 = arith.mulf %253, %254 : vector<7x7x128xf32>
    %256 = arith.addf %248, %255 : vector<7x7x128xf32>
    %257 = vector.extract_strided_slice %240 {offsets = [0, 0, 2], sizes = [7, 7, 1], strides = [1, 1, 1]} : vector<7x7x4xf32> to vector<7x7x1xf32>
    %c2_144 = arith.constant 2 : index
    %c1_145 = arith.constant 1 : index
    %c2_146 = arith.constant 2 : index
    %c0_147 = arith.constant 0 : index
    %258 = vector.load %arg3[%c2_144, %c1_145, %c2_146, %c0_147] : memref<3x3x4x128xf32, #tpu.memory_space<vmem>>, vector<1x1x1x128xf32>
    %259 = vector.shape_cast %258 : vector<1x1x1x128xf32> to vector<1x128xf32>
    %260 = vector.shape_cast %259 : vector<1x128xf32> to vector<1x1x128xf32>
    %261 = vector.broadcast %257 : vector<7x7x1xf32> to vector<7x7x128xf32>
    %262 = vector.broadcast %260 : vector<1x1x128xf32> to vector<7x7x128xf32>
    %263 = arith.mulf %261, %262 : vector<7x7x128xf32>
    %264 = arith.addf %256, %263 : vector<7x7x128xf32>
    %265 = vector.extract_strided_slice %240 {offsets = [0, 0, 3], sizes = [7, 7, 1], strides = [1, 1, 1]} : vector<7x7x4xf32> to vector<7x7x1xf32>
    %c2_148 = arith.constant 2 : index
    %c1_149 = arith.constant 1 : index
    %c3_150 = arith.constant 3 : index
    %c0_151 = arith.constant 0 : index
    %266 = vector.load %arg3[%c2_148, %c1_149, %c3_150, %c0_151] : memref<3x3x4x128xf32, #tpu.memory_space<vmem>>, vector<1x1x1x128xf32>
    %267 = vector.shape_cast %266 : vector<1x1x1x128xf32> to vector<1x128xf32>
    %268 = vector.shape_cast %267 : vector<1x128xf32> to vector<1x1x128xf32>
    %269 = vector.broadcast %265 : vector<7x7x1xf32> to vector<7x7x128xf32>
    %270 = vector.broadcast %268 : vector<1x1x128xf32> to vector<7x7x128xf32>
    %271 = arith.mulf %269, %270 : vector<7x7x128xf32>
    %272 = arith.addf %264, %271 : vector<7x7x128xf32>
    %c0_152 = arith.constant 0 : index
    %c1_153 = arith.constant 1 : index
    %c1_154 = arith.constant 1 : index
    %c0_155 = arith.constant 0 : index
    %273 = vector.load %arg2[%c0_152, %c1_153, %c1_154, %c0_155] : memref<1x32x8x4xf32, #tpu.memory_space<vmem>>, vector<1x7x7x4xf32>
    %274 = vector.shape_cast %273 : vector<1x7x7x4xf32> to vector<7x7x4xf32>
    %275 = vector.extract_strided_slice %274 {offsets = [0, 0, 0], sizes = [7, 7, 1], strides = [1, 1, 1]} : vector<7x7x4xf32> to vector<7x7x1xf32>
    %c2_156 = arith.constant 2 : index
    %c2_157 = arith.constant 2 : index
    %c0_158 = arith.constant 0 : index
    %c0_159 = arith.constant 0 : index
    %276 = vector.load %arg3[%c2_156, %c2_157, %c0_158, %c0_159] : memref<3x3x4x128xf32, #tpu.memory_space<vmem>>, vector<1x1x1x128xf32>
    %277 = vector.shape_cast %276 : vector<1x1x1x128xf32> to vector<1x128xf32>
    %278 = vector.shape_cast %277 : vector<1x128xf32> to vector<1x1x128xf32>
    %279 = vector.broadcast %275 : vector<7x7x1xf32> to vector<7x7x128xf32>
    %280 = vector.broadcast %278 : vector<1x1x128xf32> to vector<7x7x128xf32>
    %281 = arith.mulf %279, %280 : vector<7x7x128xf32>
    %282 = arith.addf %272, %281 : vector<7x7x128xf32>
    %283 = vector.extract_strided_slice %274 {offsets = [0, 0, 1], sizes = [7, 7, 1], strides = [1, 1, 1]} : vector<7x7x4xf32> to vector<7x7x1xf32>
    %c2_160 = arith.constant 2 : index
    %c2_161 = arith.constant 2 : index
    %c1_162 = arith.constant 1 : index
    %c0_163 = arith.constant 0 : index
    %284 = vector.load %arg3[%c2_160, %c2_161, %c1_162, %c0_163] : memref<3x3x4x128xf32, #tpu.memory_space<vmem>>, vector<1x1x1x128xf32>
    %285 = vector.shape_cast %284 : vector<1x1x1x128xf32> to vector<1x128xf32>
    %286 = vector.shape_cast %285 : vector<1x128xf32> to vector<1x1x128xf32>
    %287 = vector.broadcast %283 : vector<7x7x1xf32> to vector<7x7x128xf32>
    %288 = vector.broadcast %286 : vector<1x1x128xf32> to vector<7x7x128xf32>
    %289 = arith.mulf %287, %288 : vector<7x7x128xf32>
    %290 = arith.addf %282, %289 : vector<7x7x128xf32>
    %291 = vector.extract_strided_slice %274 {offsets = [0, 0, 2], sizes = [7, 7, 1], strides = [1, 1, 1]} : vector<7x7x4xf32> to vector<7x7x1xf32>
    %c2_164 = arith.constant 2 : index
    %c2_165 = arith.constant 2 : index
    %c2_166 = arith.constant 2 : index
    %c0_167 = arith.constant 0 : index
    %292 = vector.load %arg3[%c2_164, %c2_165, %c2_166, %c0_167] : memref<3x3x4x128xf32, #tpu.memory_space<vmem>>, vector<1x1x1x128xf32>
    %293 = vector.shape_cast %292 : vector<1x1x1x128xf32> to vector<1x128xf32>
    %294 = vector.shape_cast %293 : vector<1x128xf32> to vector<1x1x128xf32>
    %295 = vector.broadcast %291 : vector<7x7x1xf32> to vector<7x7x128xf32>
    %296 = vector.broadcast %294 : vector<1x1x128xf32> to vector<7x7x128xf32>
    %297 = arith.mulf %295, %296 : vector<7x7x128xf32>
    %298 = arith.addf %290, %297 : vector<7x7x128xf32>
    %299 = vector.extract_strided_slice %274 {offsets = [0, 0, 3], sizes = [7, 7, 1], strides = [1, 1, 1]} : vector<7x7x4xf32> to vector<7x7x1xf32>
    %c2_168 = arith.constant 2 : index
    %c2_169 = arith.constant 2 : index
    %c3_170 = arith.constant 3 : index
    %c0_171 = arith.constant 0 : index
    %300 = vector.load %arg3[%c2_168, %c2_169, %c3_170, %c0_171] : memref<3x3x4x128xf32, #tpu.memory_space<vmem>>, vector<1x1x1x128xf32>
    %301 = vector.shape_cast %300 : vector<1x1x1x128xf32> to vector<1x128xf32>
    %302 = vector.shape_cast %301 : vector<1x128xf32> to vector<1x1x128xf32>
    %303 = vector.broadcast %299 : vector<7x7x1xf32> to vector<7x7x128xf32>
    %304 = vector.broadcast %302 : vector<1x1x128xf32> to vector<7x7x128xf32>
    %305 = arith.mulf %303, %304 : vector<7x7x128xf32>
    %306 = arith.addf %298, %305 : vector<7x7x128xf32>
    %c0_i32 = arith.constant 0 : i32
    %307 = arith.cmpi eq, %arg0, %c0_i32 : i32
    %c0_i32_172 = arith.constant 0 : i32
    %308 = arith.cmpi eq, %arg1, %c0_i32_172 : i32
    %309 = arith.andi %307, %308 : i1
    %310 = arith.extui %309 : i1 to i32
    %c0_i32_173 = arith.constant 0 : i32
    %311 = arith.cmpi ne, %310, %c0_i32_173 : i32
    scf.if %311 {
      %cst_180 = arith.constant 0.000000e+00 : f32
      %323 = vector.broadcast %cst_180 : f32 to vector<1x128xf32>
      %c0_181 = arith.constant 0 : index
      %c0_182 = arith.constant 0 : index
      %324 = vector.load %arg7[%c0_181, %c0_182] : memref<1x128xf32, #tpu.memory_space<vmem>>, vector<1x128xf32>
      tpu.vector_store %arg7[%c0_181, %c0_182], %323 {strides = array<i32>} : memref<1x128xf32, #tpu.memory_space<vmem>>, vector<1x128xf32>,
      %cst_183 = arith.constant 0.000000e+00 : f32
      %325 = vector.broadcast %cst_183 : f32 to vector<1x128xf32>
      %c0_184 = arith.constant 0 : index
      %c0_185 = arith.constant 0 : index
      %326 = vector.load %arg8[%c0_184, %c0_185] : memref<1x128xf32, #tpu.memory_space<vmem>>, vector<1x128xf32>
      tpu.vector_store %arg8[%c0_184, %c0_185], %325 {strides = array<i32>} : memref<1x128xf32, #tpu.memory_space<vmem>>, vector<1x128xf32>,
    } else {
    }
    %c0_i32_174 = arith.constant 0 : i32
    %312 = arith.cmpi eq, %arg0, %c0_i32_174 : i32
    %313 = arith.extui %312 : i1 to i32
    %c0_i32_175 = arith.constant 0 : i32
    %314 = arith.cmpi ne, %313, %c0_i32_175 : i32
    scf.if %314 {
      %cst_180 = arith.constant dense<0.000000e+00> : vector<7x128xf32>
      %323 = vector.multi_reduction <add>, %306, %cst_180 [0] : vector<7x7x128xf32> to vector<7x128xf32>
      %cst_181 = arith.constant dense<0.000000e+00> : vector<128xf32>
      %324 = vector.multi_reduction <add>, %323, %cst_181 [0] : vector<7x128xf32> to vector<128xf32>
      %325 = vector.shape_cast %324 : vector<128xf32> to vector<1x128xf32>
      %326 = arith.mulf %306, %306 : vector<7x7x128xf32>
      %cst_182 = arith.constant dense<0.000000e+00> : vector<7x128xf32>
      %327 = vector.multi_reduction <add>, %326, %cst_182 [0] : vector<7x7x128xf32> to vector<7x128xf32>
      %cst_183 = arith.constant dense<0.000000e+00> : vector<128xf32>
      %328 = vector.multi_reduction <add>, %327, %cst_183 [0] : vector<7x128xf32> to vector<128xf32>
      %329 = vector.shape_cast %328 : vector<128xf32> to vector<1x128xf32>
      %c0_184 = arith.constant 0 : index
      %c0_185 = arith.constant 0 : index
      %330 = vector.load %arg7[%c0_184, %c0_185] : memref<1x128xf32, #tpu.memory_space<vmem>>, vector<1x128xf32>
      %331 = arith.addf %330, %325 : vector<1x128xf32>
      %c0_186 = arith.constant 0 : index
      %c0_187 = arith.constant 0 : index
      %332 = vector.load %arg7[%c0_186, %c0_187] : memref<1x128xf32, #tpu.memory_space<vmem>>, vector<1x128xf32>
      tpu.vector_store %arg7[%c0_186, %c0_187], %331 {strides = array<i32>} : memref<1x128xf32, #tpu.memory_space<vmem>>, vector<1x128xf32>,
      %c0_188 = arith.constant 0 : index
      %c0_189 = arith.constant 0 : index
      %333 = vector.load %arg8[%c0_188, %c0_189] : memref<1x128xf32, #tpu.memory_space<vmem>>, vector<1x128xf32>
      %334 = arith.addf %333, %329 : vector<1x128xf32>
      %c0_190 = arith.constant 0 : index
      %c0_191 = arith.constant 0 : index
      %335 = vector.load %arg8[%c0_190, %c0_191] : memref<1x128xf32, #tpu.memory_space<vmem>>, vector<1x128xf32>
      tpu.vector_store %arg8[%c0_190, %c0_191], %334 {strides = array<i32>} : memref<1x128xf32, #tpu.memory_space<vmem>>, vector<1x128xf32>,
    } else {
    }
    %c1_i32 = arith.constant 1 : i32
    %315 = arith.cmpi eq, %arg0, %c1_i32 : i32
    %c0_i32_176 = arith.constant 0 : i32
    %316 = arith.cmpi eq, %arg1, %c0_i32_176 : i32
    %317 = arith.andi %315, %316 : i1
    %318 = arith.extui %317 : i1 to i32
    %c0_i32_177 = arith.constant 0 : i32
    %319 = arith.cmpi ne, %318, %c0_i32_177 : i32
    scf.if %319 {
      %c0_180 = arith.constant 0 : index
      %c0_181 = arith.constant 0 : index
      %323 = vector.load %arg7[%c0_180, %c0_181] : memref<1x128xf32, #tpu.memory_space<vmem>>, vector<1x128xf32>
      %cst_182 = arith.constant 0.0102040814 : f32
      %324 = vector.broadcast %cst_182 : f32 to vector<1x128xf32>
      %325 = arith.mulf %323, %324 : vector<1x128xf32>
      %c0_183 = arith.constant 0 : index
      %c0_184 = arith.constant 0 : index
      %326 = vector.load %arg8[%c0_183, %c0_184] : memref<1x128xf32, #tpu.memory_space<vmem>>, vector<1x128xf32>
      %cst_185 = arith.constant 0.0102040814 : f32
      %327 = vector.broadcast %cst_185 : f32 to vector<1x128xf32>
      %328 = arith.mulf %326, %327 : vector<1x128xf32>
      %329 = arith.mulf %325, %325 : vector<1x128xf32>
      %330 = arith.subf %328, %329 : vector<1x128xf32>
      %c0_186 = arith.constant 0 : index
      %c0_187 = arith.constant 0 : index
      %331 = vector.load %arg4[%c0_186, %c0_187] : memref<1x128xf32, #tpu.memory_space<vmem>>, vector<1x128xf32>
      %cst_188 = arith.constant 9.99999974E-6 : f32
      %332 = vector.broadcast %cst_188 : f32 to vector<1x128xf32>
      %333 = arith.addf %330, %332 : vector<1x128xf32>
      %334 = math.rsqrt %333 : vector<1x128xf32>
      %335 = arith.mulf %331, %334 : vector<1x128xf32>
      %c0_189 = arith.constant 0 : index
      %c0_190 = arith.constant 0 : index
      %336 = vector.load %arg9[%c0_189, %c0_190] : memref<1x128xf32, #tpu.memory_space<vmem>>, vector<1x128xf32>
      tpu.vector_store %arg9[%c0_189, %c0_190], %335 {strides = array<i32>} : memref<1x128xf32, #tpu.memory_space<vmem>>, vector<1x128xf32>,
      %c0_191 = arith.constant 0 : index
      %c0_192 = arith.constant 0 : index
      %337 = vector.load %arg5[%c0_191, %c0_192] : memref<1x128xf32, #tpu.memory_space<vmem>>, vector<1x128xf32>
      %338 = arith.mulf %325, %335 : vector<1x128xf32>
      %339 = arith.subf %337, %338 : vector<1x128xf32>
      %c0_193 = arith.constant 0 : index
      %c0_194 = arith.constant 0 : index
      %340 = vector.load %arg10[%c0_193, %c0_194] : memref<1x128xf32, #tpu.memory_space<vmem>>, vector<1x128xf32>
      tpu.vector_store %arg10[%c0_193, %c0_194], %339 {strides = array<i32>} : memref<1x128xf32, #tpu.memory_space<vmem>>, vector<1x128xf32>,
    } else {
    }
    %c1_i32_178 = arith.constant 1 : i32
    %320 = arith.cmpi eq, %arg0, %c1_i32_178 : i32
    %321 = arith.extui %320 : i1 to i32
    %c0_i32_179 = arith.constant 0 : i32
    %322 = arith.cmpi ne, %321, %c0_i32_179 : i32
    scf.if %322 {
      %c0_180 = arith.constant 0 : index
      %c0_181 = arith.constant 0 : index
      %323 = vector.load %arg9[%c0_180, %c0_181] : memref<1x128xf32, #tpu.memory_space<vmem>>, vector<1x128xf32>
      %324 = vector.shape_cast %323 : vector<1x128xf32> to vector<1x1x128xf32>
      %325 = vector.broadcast %324 : vector<1x1x128xf32> to vector<7x7x128xf32>
      %326 = arith.mulf %306, %325 : vector<7x7x128xf32>
      %c0_182 = arith.constant 0 : index
      %c0_183 = arith.constant 0 : index
      %327 = vector.load %arg10[%c0_182, %c0_183] : memref<1x128xf32, #tpu.memory_space<vmem>>, vector<1x128xf32>
      %328 = vector.shape_cast %327 : vector<1x128xf32> to vector<1x1x128xf32>
      %329 = vector.broadcast %328 : vector<1x1x128xf32> to vector<7x7x128xf32>
      %330 = arith.addf %326, %329 : vector<7x7x128xf32>
      %cst_184 = arith.constant 0.000000e+00 : f32
      %331 = vector.broadcast %cst_184 : f32 to vector<7x7x128xf32>
      %332 = arith.maximumf %330, %331 : vector<7x7x128xf32>
      %c0_185 = arith.constant 0 : index
      %c0_186 = arith.constant 0 : index
      %c0_187 = arith.constant 0 : index
      %c0_188 = arith.constant 0 : index
      %333 = vector.load %arg6[%c0_185, %c0_186, %c0_187, %c0_188] : memref<1x7x7x128xf32, #tpu.memory_space<vmem>>, vector<1x7x7x128xf32>
      %334 = vector.shape_cast %333 : vector<1x7x7x128xf32> to vector<7x7x128xf32>
      %335 = vector.shape_cast %332 : vector<7x7x128xf32> to vector<1x7x7x128xf32>
      tpu.vector_store %arg6[%c0_185, %c0_186, %c0_187, %c0_188], %335 {strides = array<i32>} : memref<1x7x7x128xf32, #tpu.memory_space<vmem>>, vector<1x7x7x128xf32>,
    } else {
    }
    return
  }
  func.func @transform_0(%arg0: i32, %arg1: i32) -> (i32, i32, i32, i32) {
    %c0_i32 = arith.constant 0 : i32
    %c0_i32_0 = arith.constant 0 : i32
    %c0_i32_1 = arith.constant 0 : i32
    %c0_i32_2 = arith.constant 0 : i32
    return %arg1, %c0_i32, %c0_i32_0, %c0_i32_1 : i32, i32, i32, i32
  }
  func.func @transform_1(%arg0: i32, %arg1: i32) -> (i32, i32, i32, i32) {
    %c0_i32 = arith.constant 0 : i32
    %c0_i32_0 = arith.constant 0 : i32
    %c0_i32_1 = arith.constant 0 : i32
    %c0_i32_2 = arith.constant 0 : i32
    %c0_i32_3 = arith.constant 0 : i32
    return %c0_i32, %c0_i32_0, %c0_i32_1, %c0_i32_2 : i32, i32, i32, i32
  }
  func.func @transform_2(%arg0: i32, %arg1: i32) -> (i32, i32) {
    %c0_i32 = arith.constant 0 : i32
    %c0_i32_0 = arith.constant 0 : i32
    %c0_i32_1 = arith.constant 0 : i32
    return %c0_i32, %c0_i32_0 : i32, i32
  }
  func.func @transform_3(%arg0: i32, %arg1: i32) -> (i32, i32) {
    %c0_i32 = arith.constant 0 : i32
    %c0_i32_0 = arith.constant 0 : i32
    %c0_i32_1 = arith.constant 0 : i32
    return %c0_i32, %c0_i32_0 : i32, i32
  }
  func.func @transform_4(%arg0: i32, %arg1: i32) -> (i32, i32, i32, i32) {
    %0 = arith.muli %arg1, %arg0 : i32
    %c0_i32 = arith.constant 0 : i32
    %c0_i32_0 = arith.constant 0 : i32
    %c0_i32_1 = arith.constant 0 : i32
    %c0_i32_2 = arith.constant 0 : i32
    return %0, %c0_i32, %c0_i32_0, %c0_i32_1 : i32, i32, i32, i32
  }
}

</mosaic_0001>

<llo_original>
// kernel: tpu_custom_call.1
$region0: #{tpu_custom_call.1}
  #allocation0 [shape = 'u32[]', space=smem, size = 0x4, offset = 0x4, fixed_abs, tag = 'smem constant byte address 0x4 - core index']
  #allocation1 [shape = 'u32[72,128]{1,0:T(1,128)}', space=vmem, size = 0x9000, scoped, tag = 'internal scratch']
  #allocation2 [shape = 'f32[1,128]{1,0:T(1,128)}', space=vmem, size = 0x200, scoped, tag = 'scratch operand']
  #allocation3 [shape = 'f32[1,128]{1,0:T(1,128)}', space=vmem, size = 0x200, scoped, tag = 'scratch operand']
  #allocation4 [shape = 'f32[1,128]{1,0:T(1,128)}', space=vmem, size = 0x200, scoped, tag = 'scratch operand']
  #allocation5 [shape = 'f32[1,128]{1,0:T(1,128)}', space=vmem, size = 0x200, scoped, tag = 'scratch operand']
  %s0 = inlined_call_operand.vmem [shape: f32[2,32,8,4], index: 0, kind: input, shape index: {}]
  %s1 = inlined_call_operand.vmem [shape: f32[3,3,4,128], index: 1, kind: input, shape index: {}]
  %s2 = inlined_call_operand.vmem [shape: f32[1,128], index: 2, kind: input, shape index: {}]
  %s3 = inlined_call_operand.vmem [shape: f32[1,128], index: 3, kind: input, shape index: {}]
  %s4 = inlined_call_operand.vmem [shape: f32[2,7,7,128], index: 4, kind: output, shape index: {}]
  %s5 = sld [smem:[#allocation0]]
  $region65: #{tpu_custom_call.1} parent=0
    _
  %s7 = ssub.s32 1, %s5
  %s8 = scalar_select 0, %s7, %s5
  loop: start=0, step=1, limit=6
  $region2: #{tpu_custom_call.1} parent=0 // loop_pre_header
    _
  $region3: #{tpu_custom_call.1} parent=0 // loop_header
    %s10 = sphi 0, %s14
    %p11 = scmp.ge.s32.totalorder %s10, 6
    %s17 = sphi 0, %s29
    %s18 = sphi 0, %s25
    %s19 = sphi 0, %s17
    %s20 = sphi 0, %s18
    %s21 = sphi 0, %s19
    %s22 = sphi 0, %s20
    %s32 = sphi 0, %s34
    %s35 = sphi 0, %s32
    %s36 = sphi 0, %s35
    %s52 = sphi 0, %s36
    %s56 = sphi 0, %s56
    %s58 = sphi 0, %s56
    %s59 = sphi 0, %s58
    %s73 = sphi 0, %s59
    %s77 = sphi 0, %s77
    %s79 = sphi 0, %s77
    %s80 = sphi 0, %s79
    %s94 = sphi 0, %s80
    %s98 = sphi 0, %s98
    %s100 = sphi 0, %s98
    %s101 = sphi 0, %s100
    %s115 = sphi 0, %s101
    %s123 = sphi 0, %s125
    %s126 = sphi 0, %s123
    %s127 = sphi 0, %s126
    %s143 = sphi 0, %s127
  $region4: #{tpu_custom_call.1} parent=0 // loop_header_branch
    %13 = sbr.rel (%p11) target = $region8
  $region5: #{tpu_custom_call.1} parent=0 // loop_body
    %s15 = ssub.s32 %s10, 1
    %s16 = ssub.s32 %s10, 2
    %s23 = sadd.s32 1, %s18
    %p24 = scmp.ge.s32.totalorder %s23, 2
    %s25 = scalar_select %p24, 0, %s23
    %s26 = sadd.s32 1, %s17
    %s27 = scalar_select %p24, %s26, %s17
    %p28 = scmp.ge.s32.totalorder %s27, 2
    %s29 = scalar_select %p28, 0, %s27
    %s30 = ssub.s32 %s18, %s25
    %p31 = scmp.eq.s32.totalorder %s30, 0
    %s33 = sadd.s32 %s32, 1
    %s34 = scalar_select %p31, %s32, %s33
    %p37 = pneg %p31
    %p38 = scmp.eq.s32.totalorder %s10, 3
    %p39 = por %p37, %p38
    %p40 = scmp.ne.s32.totalorder %s32, %s35
    %p41 = scmp.eq.s32.totalorder %s10, 0
    %p42 = por %p40, %p41
    %p43 = scmp.ne.s32.totalorder %s32, %s35
    %p44 = scmp.eq.s32.totalorder %s15, 3
    %p45 = por %p43, %p44
    %p46 = scmp.ne.s32.totalorder %s35, %s36
    %p47 = scmp.eq.s32.totalorder %s15, 0
    %p48 = por %p46, %p47
    %p49 = scmp.ne.s32.totalorder %s35, %s36
    %p50 = scmp.eq.s32.totalorder %s16, 3
    %p51 = por %p49, %p50
    %p53 = scmp.ne.s32.totalorder %s36, %s52
    %p54 = scmp.eq.s32.totalorder %s16, 0
    %p55 = por %p53, %p54
    %s57 = sadd.s32 %s56, 1
    %p60 = scmp.eq.s32.totalorder %s10, 3
    %p61 = scmp.ne.s32.totalorder %s56, %s58
    %p62 = scmp.eq.s32.totalorder %s10, 0
    %p63 = por %p61, %p62
    %p64 = scmp.ne.s32.totalorder %s56, %s58
    %p65 = scmp.eq.s32.totalorder %s15, 3
    %p66 = por %p64, %p65
    %p67 = scmp.ne.s32.totalorder %s58, %s59
    %p68 = scmp.eq.s32.totalorder %s15, 0
    %p69 = por %p67, %p68
    %p70 = scmp.ne.s32.totalorder %s58, %s59
    %p71 = scmp.eq.s32.totalorder %s16, 3
    %p72 = por %p70, %p71
    %p74 = scmp.ne.s32.totalorder %s59, %s73
    %p75 = scmp.eq.s32.totalorder %s16, 0
    %p76 = por %p74, %p75
    %s78 = sadd.s32 %s77, 1
    %p81 = scmp.eq.s32.totalorder %s10, 3
    %p82 = scmp.ne.s32.totalorder %s77, %s79
    %p83 = scmp.eq.s32.totalorder %s10, 0
    %p84 = por %p82, %p83
    %p85 = scmp.ne.s32.totalorder %s77, %s79
    %p86 = scmp.eq.s32.totalorder %s15, 3
    %p87 = por %p85, %p86
    %p88 = scmp.ne.s32.totalorder %s79, %s80
    %p89 = scmp.eq.s32.totalorder %s15, 0
    %p90 = por %p88, %p89
    %p91 = scmp.ne.s32.totalorder %s79, %s80
    %p92 = scmp.eq.s32.totalorder %s16, 3
    %p93 = por %p91, %p92
    %p95 = scmp.ne.s32.totalorder %s80, %s94
    %p96 = scmp.eq.s32.totalorder %s16, 0
    %p97 = por %p95, %p96
    %s99 = sadd.s32 %s98, 1
    %p102 = scmp.eq.s32.totalorder %s10, 3
    %p103 = scmp.ne.s32.totalorder %s98, %s100
    %p104 = scmp.eq.s32.totalorder %s10, 0
    %p105 = por %p103, %p104
    %p106 = scmp.ne.s32.totalorder %s98, %s100
    %p107 = scmp.eq.s32.totalorder %s15, 3
    %p108 = por %p106, %p107
    %p109 = scmp.ne.s32.totalorder %s100, %s101
    %p110 = scmp.eq.s32.totalorder %s15, 0
    %p111 = por %p109, %p110
    %p112 = scmp.ne.s32.totalorder %s100, %s101
    %p113 = scmp.eq.s32.totalorder %s16, 3
    %p114 = por %p112, %p113
    %p116 = scmp.ne.s32.totalorder %s101, %s115
    %p117 = scmp.eq.s32.totalorder %s16, 0
    %p118 = por %p116, %p117
    %s119 = smul.u32 %s18, %s17
    %s120 = smul.u32 %s25, %s29
    %s121 = ssub.s32 %s119, %s120
    %p122 = scmp.eq.s32.totalorder %s121, 0
    %s124 = sadd.s32 %s123, 1
    %s125 = scalar_select %p122, %s123, %s124
    %p128 = pneg %p122
    %p129 = scmp.eq.s32.totalorder %s10, 3
    %p130 = por %p128, %p129
    %p131 = scmp.ne.s32.totalorder %s123, %s126
    %p132 = scmp.eq.s32.totalorder %s10, 0
    %p133 = por %p131, %p132
    %p134 = scmp.ne.s32.totalorder %s123, %s126
    %p135 = scmp.eq.s32.totalorder %s15, 3
    %p136 = por %p134, %p135
    %p137 = scmp.ne.s32.totalorder %s126, %s127
    %p138 = scmp.eq.s32.totalorder %s15, 0
    %p139 = por %p137, %p138
    %p140 = scmp.ne.s32.totalorder %s126, %s127
    %p141 = scmp.eq.s32.totalorder %s16, 3
    %p142 = por %p140, %p141
    %p144 = scmp.ne.s32.totalorder %s127, %s143
    %p145 = scmp.eq.s32.totalorder %s16, 0
    %p146 = por %p144, %p145
    %p147 = scmp.le.s32.totalorder 1, %s10
    %p148 = scmp.lt.s32.totalorder %s10, 5
    %p149 = pnand %p147, %p148
    %p150 = pneg %p149
    // Predicated region
    $region9: #{tpu_custom_call.1} parent=5 // pred_check
      _
    $region10: #{tpu_custom_call.1} parent=5 // pred_check_branch
      %152 = sbr.rel (%p149) target = $region12
    $region11: #{tpu_custom_call.1} parent=5 // pred_region
      %s153 = ssub.s32 %s10, 1
      // Predicated region
      $region13: #{tpu_custom_call.1} parent=11 // pred_check
        %p154 = pneg %p69
      $region14: #{tpu_custom_call.1} parent=11 // pred_check_branch
        %156 = sbr.rel (%p154) target = $region16
      $region15: #{tpu_custom_call.1} parent=11 // pred_region
        _
      $region16: #{tpu_custom_call.1} parent=11 // pred_fallthru
        _
      // Predicated region
      $region17: #{tpu_custom_call.1} parent=11 // pred_check
        %p157 = pneg %p90
      $region18: #{tpu_custom_call.1} parent=11 // pred_check_branch
        %159 = sbr.rel (%p157) target = $region20
      $region19: #{tpu_custom_call.1} parent=11 // pred_region
        _
      $region20: #{tpu_custom_call.1} parent=11 // pred_fallthru
        _
      // Predicated region
      $region21: #{tpu_custom_call.1} parent=11 // pred_check
        %p160 = pneg %p111
      $region22: #{tpu_custom_call.1} parent=11 // pred_check_branch
        %162 = sbr.rel (%p160) target = $region24
      $region23: #{tpu_custom_call.1} parent=11 // pred_region
        _
      $region24: #{tpu_custom_call.1} parent=11 // pred_fallthru
        _
    $region12: #{tpu_custom_call.1} parent=5 // pred_fallthru
      _
    %p163 = scmp.lt.s32.totalorder %s10, 4
    // Predicated region
    $region25: #{tpu_custom_call.1} parent=5 // pred_check
      %p164 = pneg %p163
    $region26: #{tpu_custom_call.1} parent=5 // pred_check_branch
      %166 = sbr.rel (%p164) target = $region28
    $region27: #{tpu_custom_call.1} parent=5 // pred_region
      // Predicated region
      $region29: #{tpu_custom_call.1} parent=27 // pred_check
        %p167 = pneg %p42
      $region30: #{tpu_custom_call.1} parent=27 // pred_check_branch
        %169 = sbr.rel (%p167) target = $region32
      $region31: #{tpu_custom_call.1} parent=27 // pred_region
        %p170 = scmp.lt.s32.totalorder %s18, 1
        %s171 = scalar_select %p170, %s18, 1
        %s172 = smul.addr %s171, 32
        %s173 = smul.addr %s172, 8
        %s174 = scalar_lea.vmem %s0, %s173
      $region32: #{tpu_custom_call.1} parent=27 // pred_fallthru
        _
    $region28: #{tpu_custom_call.1} parent=5 // pred_fallthru
      _
    %p175 = scmp.le.s32.totalorder 1, %s10
    %p176 = scmp.lt.s32.totalorder %s10, 5
    %p177 = pnand %p175, %p176
    %p178 = pneg %p177
    // Predicated region
    $region33: #{tpu_custom_call.1} parent=5 // pred_check
      _
    $region34: #{tpu_custom_call.1} parent=5 // pred_check_branch
      %180 = sbr.rel (%p177) target = $region36
    $region35: #{tpu_custom_call.1} parent=5 // pred_region
      %s181 = ssub.s32 %s10, 1
      %p182 = scmp.lt.s32.totalorder %s20, 1
      %s183 = scalar_select %p182, %s20, 1
      %s184 = smul.addr %s183, 32
      %s185 = smul.addr %s184, 8
      %s186 = scalar_lea.vmem %s0, %s185
      %p187 = pneg %p48
      %p188 = pneg %p45
      %p189 = pneg %p69
      %p190 = pneg %p66
      %p191 = pneg %p90
      %p192 = pneg %p87
      %p193 = pneg %p111
      %p194 = pneg %p108
      %p195 = pneg %p139
      %p196 = pneg %p136
      %s197 = smul.u32 %s20, %s19
      %p198 = scmp.lt.s32.totalorder %s197, 1
      %s199 = scalar_select %p198, %s197, 1
      %s200 = smul.addr %s199, 7
      %s201 = smul.addr %s200, 8
      %s202 = scalar_lea.vmem %s4, %s201
      %p203 = scmp.lt.s32.totalorder %s20, 1
      %s204 = scalar_select %p203, %s20, 1
      %s205 = smul.addr %s204, 32
      %s206 = smul.addr %s205, 8
      %s207 = scalar_lea.vmem %s0, %s206
      %s208 = smul.u32 %s20, %s19
      %p209 = scmp.lt.s32.totalorder %s208, 1
      %s210 = scalar_select %p209, %s208, 1
      %s211 = smul.addr %s210, 7
      %s212 = smul.addr %s211, 8
      %s213 = scalar_lea.vmem %s4, %s212
      %s214 = smul.u32 %s20, %s19
      %v215 = vld [vmem:[%s207] sm:$0x7f]
      %v216 = vld [vmem:[%s207 + $0x8] sm:$0x7f]
      %v217 = vld [vmem:[%s207 + $0x10] sm:$0x7f]
      %v218 = vld [vmem:[%s207 + $0x18] sm:$0x7f]
      %v219 = vld [vmem:[%s207 + $0x20] sm:$0x7f]
      %v220 = vld [vmem:[%s207 + $0x28] sm:$0x7f]
      %v221 = vld [vmem:[%s207 + $0x30] sm:$0x7f]
      %v222 = vld [vmem:[%s1] sm:$0x1]
      %224 = vset.pattern.permute.xlu0 0
      %225 = vperm.xlu0 %224, %v215
      %v226 = vpop.permute.xlu0 %225
      %229 = vset.pattern.permute.xlu0 0
      %230 = vperm.xlu0 %229, %v216
      %v231 = vpop.permute.xlu0 %230
      %234 = vset.pattern.permute.xlu0 0
      %235 = vperm.xlu0 %234, %v217
      %v236 = vpop.permute.xlu0 %235
      %239 = vset.pattern.permute.xlu0 0
      %240 = vperm.xlu0 %239, %v218
      %v241 = vpop.permute.xlu0 %240
      %244 = vset.pattern.permute.xlu0 0
      %245 = vperm.xlu0 %244, %v219
      %v246 = vpop.permute.xlu0 %245
      %249 = vset.pattern.permute.xlu0 0
      %250 = vperm.xlu0 %249, %v220
      %v251 = vpop.permute.xlu0 %250
      %254 = vset.pattern.permute.xlu0 0
      %255 = vperm.xlu0 %254, %v221
      %v256 = vpop.permute.xlu0 %255
      %v258 = vperm.slane %v222, 0
      %v259 = vmul.f32 %v226, %v258
      %v260 = vmul.f32 %v231, %v258
      %v261 = vmul.f32 %v236, %v258
      %v262 = vmul.f32 %v241, %v258
      %v263 = vmul.f32 %v246, %v258
      %v264 = vmul.f32 %v251, %v258
      %v265 = vmul.f32 %v256, %v258
      %v266 = vadd.f32 %v259, 0.0
      %v267 = vadd.f32 %v260, 0.0
      %v268 = vadd.f32 %v261, 0.0
      %v269 = vadd.f32 %v262, 0.0
      %v270 = vadd.f32 %v263, 0.0
      %v271 = vadd.f32 %v264, 0.0
      %v272 = vadd.f32 %v265, 0.0
      %v273 = vld [vmem:[%s1 + $0x1] sm:$0x1]
      %274 = vset.pattern.permute.xlu0 1
      %275 = vperm.xlu0 %274, %v215
      %v276 = vpop.permute.xlu0 %275
      %278 = vset.pattern.permute.xlu0 1
      %279 = vperm.xlu0 %278, %v216
      %v280 = vpop.permute.xlu0 %279
      %282 = vset.pattern.permute.xlu0 1
      %283 = vperm.xlu0 %282, %v217
      %v284 = vpop.permute.xlu0 %283
      %286 = vset.pattern.permute.xlu0 1
      %287 = vperm.xlu0 %286, %v218
      %v288 = vpop.permute.xlu0 %287
      %290 = vset.pattern.permute.xlu0 1
      %291 = vperm.xlu0 %290, %v219
      %v292 = vpop.permute.xlu0 %291
      %294 = vset.pattern.permute.xlu0 1
      %295 = vperm.xlu0 %294, %v220
      %v296 = vpop.permute.xlu0 %295
      %298 = vset.pattern.permute.xlu0 1
      %299 = vperm.xlu0 %298, %v221
      %v300 = vpop.permute.xlu0 %299
      %v302 = vperm.slane %v273, 0
      %v303 = vmul.f32 %v276, %v302
      %v304 = vmul.f32 %v280, %v302
      %v305 = vmul.f32 %v284, %v302
      %v306 = vmul.f32 %v288, %v302
      %v307 = vmul.f32 %v292, %v302
      %v308 = vmul.f32 %v296, %v302
      %v309 = vmul.f32 %v300, %v302
      %v310 = vadd.f32 %v266, %v303
      %v311 = vadd.f32 %v267, %v304
      %v312 = vadd.f32 %v268, %v305
      %v313 = vadd.f32 %v269, %v306
      %v314 = vadd.f32 %v270, %v307
      %v315 = vadd.f32 %v271, %v308
      %v316 = vadd.f32 %v272, %v309
      %v317 = vld [vmem:[%s1 + $0x2] sm:$0x1]
      %318 = vset.pattern.permute.xlu0 2
      %319 = vperm.xlu0 %318, %v215
      %v320 = vpop.permute.xlu0 %319
      %322 = vset.pattern.permute.xlu0 2
      %323 = vperm.xlu0 %322, %v216
      %v324 = vpop.permute.xlu0 %323
      %326 = vset.pattern.permute.xlu0 2
      %327 = vperm.xlu0 %326, %v217
      %v328 = vpop.permute.xlu0 %327
      %330 = vset.pattern.permute.xlu0 2
      %331 = vperm.xlu0 %330, %v218
      %v332 = vpop.permute.xlu0 %331
      %334 = vset.pattern.permute.xlu0 2
      %335 = vperm.xlu0 %334, %v219
      %v336 = vpop.permute.xlu0 %335
      %338 = vset.pattern.permute.xlu0 2
      %339 = vperm.xlu0 %338, %v220
      %v340 = vpop.permute.xlu0 %339
      %342 = vset.pattern.permute.xlu0 2
      %343 = vperm.xlu0 %342, %v221
      %v344 = vpop.permute.xlu0 %343
      %v346 = vperm.slane %v317, 0
      %v347 = vmul.f32 %v320, %v346
      %v348 = vmul.f32 %v324, %v346
      %v349 = vmul.f32 %v328, %v346
      %v350 = vmul.f32 %v332, %v346
      %v351 = vmul.f32 %v336, %v346
      %v352 = vmul.f32 %v340, %v346
      %v353 = vmul.f32 %v344, %v346
      %v354 = vadd.f32 %v310, %v347
      %v355 = vadd.f32 %v311, %v348
      %v356 = vadd.f32 %v312, %v349
      %v357 = vadd.f32 %v313, %v350
      %v358 = vadd.f32 %v314, %v351
      %v359 = vadd.f32 %v315, %v352
      %v360 = vadd.f32 %v316, %v353
      %v361 = vld [vmem:[%s1 + $0x3] sm:$0x1]
      %362 = vset.pattern.permute.xlu0 3
      %363 = vperm.xlu0 %362, %v215
      %v364 = vpop.permute.xlu0 %363
      %366 = vset.pattern.permute.xlu0 3
      %367 = vperm.xlu0 %366, %v216
      %v368 = vpop.permute.xlu0 %367
      %370 = vset.pattern.permute.xlu0 3
      %371 = vperm.xlu0 %370, %v217
      %v372 = vpop.permute.xlu0 %371
      %374 = vset.pattern.permute.xlu0 3
      %375 = vperm.xlu0 %374, %v218
      %v376 = vpop.permute.xlu0 %375
      %378 = vset.pattern.permute.xlu0 3
      %379 = vperm.xlu0 %378, %v219
      %v380 = vpop.permute.xlu0 %379
      %382 = vset.pattern.permute.xlu0 3
      %383 = vperm.xlu0 %382, %v220
      %v384 = vpop.permute.xlu0 %383
      %386 = vset.pattern.permute.xlu0 3
      %387 = vperm.xlu0 %386, %v221
      %v388 = vpop.permute.xlu0 %387
      %v390 = vperm.slane %v361, 0
      %v391 = vmul.f32 %v364, %v390
      %v392 = vmul.f32 %v368, %v390
      %v393 = vmul.f32 %v372, %v390
      %v394 = vmul.f32 %v376, %v390
      %v395 = vmul.f32 %v380, %v390
      %v396 = vmul.f32 %v384, %v390
      %v397 = vmul.f32 %v388, %v390
      %v398 = vadd.f32 %v354, %v391
      %v399 = vadd.f32 %v355, %v392
      %v400 = vadd.f32 %v356, %v393
      %v401 = vadd.f32 %v357, %v394
      %v402 = vadd.f32 %v358, %v395
      %v403 = vadd.f32 %v359, %v396
      %v404 = vadd.f32 %v360, %v397
      %s405 = scalar_lea.vmem %s207, 64
      %v406 = vld [vmem:[%s405] sm:$0x7f]
      %v407 = vld [vmem:[%s405 + $0x8] sm:$0x7f]
      %v408 = vld [vmem:[%s405 + $0x10] sm:$0x7f]
      %v409 = vld [vmem:[%s405 + $0x18] sm:$0x7f]
      %v410 = vld [vmem:[%s405 + $0x20] sm:$0x7f]
      %v411 = vld [vmem:[%s405 + $0x28] sm:$0x7f]
      %v412 = vld [vmem:[%s405 + $0x30] sm:$0x7f]
      %s413 = scalar_lea.vmem %s1, 4
      %v414 = vld [vmem:[%s413] sm:$0x1]
      %416 = vset.pattern.permute.xlu0 0
      %417 = vperm.xlu0 %416, %v406
      %v418 = vpop.permute.xlu0 %417
      %421 = vset.pattern.permute.xlu0 0
      %422 = vperm.xlu0 %421, %v407
      %v423 = vpop.permute.xlu0 %422
      %426 = vset.pattern.permute.xlu0 0
      %427 = vperm.xlu0 %426, %v408
      %v428 = vpop.permute.xlu0 %427
      %431 = vset.pattern.permute.xlu0 0
      %432 = vperm.xlu0 %431, %v409
      %v433 = vpop.permute.xlu0 %432
      %436 = vset.pattern.permute.xlu0 0
      %437 = vperm.xlu0 %436, %v410
      %v438 = vpop.permute.xlu0 %437
      %441 = vset.pattern.permute.xlu0 0
      %442 = vperm.xlu0 %441, %v411
      %v443 = vpop.permute.xlu0 %442
      %446 = vset.pattern.permute.xlu0 0
      %447 = vperm.xlu0 %446, %v412
      %v448 = vpop.permute.xlu0 %447
      %v450 = vperm.slane %v414, 0
      %v451 = vmul.f32 %v418, %v450
      %v452 = vmul.f32 %v423, %v450
      %v453 = vmul.f32 %v428, %v450
      %v454 = vmul.f32 %v433, %v450
      %v455 = vmul.f32 %v438, %v450
      %v456 = vmul.f32 %v443, %v450
      %v457 = vmul.f32 %v448, %v450
      %v458 = vadd.f32 %v398, %v451
      %v459 = vadd.f32 %v399, %v452
      %v460 = vadd.f32 %v400, %v453
      %v461 = vadd.f32 %v401, %v454
      %v462 = vadd.f32 %v402, %v455
      %v463 = vadd.f32 %v403, %v456
      %v464 = vadd.f32 %v404, %v457
      %v465 = vld [vmem:[%s413 + $0x1] sm:$0x1]
      %466 = vset.pattern.permute.xlu0 1
      %467 = vperm.xlu0 %466, %v406
      %v468 = vpop.permute.xlu0 %467
      %470 = vset.pattern.permute.xlu0 1
      %471 = vperm.xlu0 %470, %v407
      %v472 = vpop.permute.xlu0 %471
      %474 = vset.pattern.permute.xlu0 1
      %475 = vperm.xlu0 %474, %v408
      %v476 = vpop.permute.xlu0 %475
      %478 = vset.pattern.permute.xlu0 1
      %479 = vperm.xlu0 %478, %v409
      %v480 = vpop.permute.xlu0 %479
      %482 = vset.pattern.permute.xlu0 1
      %483 = vperm.xlu0 %482, %v410
      %v484 = vpop.permute.xlu0 %483
      %486 = vset.pattern.permute.xlu0 1
      %487 = vperm.xlu0 %486, %v411
      %v488 = vpop.permute.xlu0 %487
      %490 = vset.pattern.permute.xlu0 1
      %491 = vperm.xlu0 %490, %v412
      %v492 = vpop.permute.xlu0 %491
      %v494 = vperm.slane %v465, 0
      %v495 = vmul.f32 %v468, %v494
      %v496 = vmul.f32 %v472, %v494
      %v497 = vmul.f32 %v476, %v494
      %v498 = vmul.f32 %v480, %v494
      %v499 = vmul.f32 %v484, %v494
      %v500 = vmul.f32 %v488, %v494
      %v501 = vmul.f32 %v492, %v494
      %v502 = vadd.f32 %v458, %v495
      %v503 = vadd.f32 %v459, %v496
      %v504 = vadd.f32 %v460, %v497
      %v505 = vadd.f32 %v461, %v498
      %v506 = vadd.f32 %v462, %v499
      %v507 = vadd.f32 %v463, %v500
      %v508 = vadd.f32 %v464, %v501
      %v509 = vld [vmem:[%s413 + $0x2] sm:$0x1]
      %510 = vset.pattern.permute.xlu0 2
      %511 = vperm.xlu0 %510, %v406
      %v512 = vpop.permute.xlu0 %511
      %514 = vset.pattern.permute.xlu0 2
      %515 = vperm.xlu0 %514, %v407
      %v516 = vpop.permute.xlu0 %515
      %518 = vset.pattern.permute.xlu0 2
      %519 = vperm.xlu0 %518, %v408
      %v520 = vpop.permute.xlu0 %519
      %522 = vset.pattern.permute.xlu0 2
      %523 = vperm.xlu0 %522, %v409
      %v524 = vpop.permute.xlu0 %523
      %526 = vset.pattern.permute.xlu0 2
      %527 = vperm.xlu0 %526, %v410
      %v528 = vpop.permute.xlu0 %527
      %530 = vset.pattern.permute.xlu0 2
      %531 = vperm.xlu0 %530, %v411
      %v532 = vpop.permute.xlu0 %531
      %534 = vset.pattern.permute.xlu0 2
      %535 = vperm.xlu0 %534, %v412
      %v536 = vpop.permute.xlu0 %535
      %v538 = vperm.slane %v509, 0
      %v539 = vmul.f32 %v512, %v538
      %v540 = vmul.f32 %v516, %v538
      %v541 = vmul.f32 %v520, %v538
      %v542 = vmul.f32 %v524, %v538
      %v543 = vmul.f32 %v528, %v538
      %v544 = vmul.f32 %v532, %v538
      %v545 = vmul.f32 %v536, %v538
      %v546 = vadd.f32 %v502, %v539
      %v547 = vadd.f32 %v503, %v540
      %v548 = vadd.f32 %v504, %v541
      %v549 = vadd.f32 %v505, %v542
      %v550 = vadd.f32 %v506, %v543
      %v551 = vadd.f32 %v507, %v544
      %v552 = vadd.f32 %v508, %v545
      %v553 = vld [vmem:[%s413 + $0x3] sm:$0x1]
      %554 = vset.pattern.permute.xlu0 3
      %555 = vperm.xlu0 %554, %v406
      %v556 = vpop.permute.xlu0 %555
      %558 = vset.pattern.permute.xlu0 3
      %559 = vperm.xlu0 %558, %v407
      %v560 = vpop.permute.xlu0 %559
      %562 = vset.pattern.permute.xlu0 3
      %563 = vperm.xlu0 %562, %v408
      %v564 = vpop.permute.xlu0 %563
      %566 = vset.pattern.permute.xlu0 3
      %567 = vperm.xlu0 %566, %v409
      %v568 = vpop.permute.xlu0 %567
      %570 = vset.pattern.permute.xlu0 3
      %571 = vperm.xlu0 %570, %v410
      %v572 = vpop.permute.xlu0 %571
      %574 = vset.pattern.permute.xlu0 3
      %575 = vperm.xlu0 %574, %v411
      %v576 = vpop.permute.xlu0 %575
      %578 = vset.pattern.permute.xlu0 3
      %579 = vperm.xlu0 %578, %v412
      %v580 = vpop.permute.xlu0 %579
      %v582 = vperm.slane %v553, 0
      %v583 = vmul.f32 %v556, %v582
      %v584 = vmul.f32 %v560, %v582
      %v585 = vmul.f32 %v564, %v582
      %v586 = vmul.f32 %v568, %v582
      %v587 = vmul.f32 %v572, %v582
      %v588 = vmul.f32 %v576, %v582
      %v589 = vmul.f32 %v580, %v582
      %v590 = vadd.f32 %v546, %v583
      %v591 = vadd.f32 %v547, %v584
      %v592 = vadd.f32 %v548, %v585
      %v593 = vadd.f32 %v549, %v586
      %v594 = vadd.f32 %v550, %v587
      %v595 = vadd.f32 %v551, %v588
      %v596 = vadd.f32 %v552, %v589
      %v597 = vld [vmem:[%s207 + $0x1] sm:$0x7f]
      %v598 = vld [vmem:[%s207 + $0x9] sm:$0x7f]
      %v599 = vld [vmem:[%s207 + $0x11] sm:$0x7f]
      %v600 = vld [vmem:[%s207 + $0x19] sm:$0x7f]
      %v601 = vld [vmem:[%s207 + $0x21] sm:$0x7f]
      %v602 = vld [vmem:[%s207 + $0x29] sm:$0x7f]
      %v603 = vld [vmem:[%s207 + $0x31] sm:$0x7f]
      %s604 = scalar_lea.vmem %s1, 8
      %v605 = vld [vmem:[%s604] sm:$0x1]
      %607 = vset.pattern.permute.xlu0 0
      %608 = vperm.xlu0 %607, %v597
      %v609 = vpop.permute.xlu0 %608
      %612 = vset.pattern.permute.xlu0 0
      %613 = vperm.xlu0 %612, %v598
      %v614 = vpop.permute.xlu0 %613
      %617 = vset.pattern.permute.xlu0 0
      %618 = vperm.xlu0 %617, %v599
      %v619 = vpop.permute.xlu0 %618
      %622 = vset.pattern.permute.xlu0 0
      %623 = vperm.xlu0 %622, %v600
      %v624 = vpop.permute.xlu0 %623
      %627 = vset.pattern.permute.xlu0 0
      %628 = vperm.xlu0 %627, %v601
      %v629 = vpop.permute.xlu0 %628
      %632 = vset.pattern.permute.xlu0 0
      %633 = vperm.xlu0 %632, %v602
      %v634 = vpop.permute.xlu0 %633
      %637 = vset.pattern.permute.xlu0 0
      %638 = vperm.xlu0 %637, %v603
      %v639 = vpop.permute.xlu0 %638
      %v641 = vperm.slane %v605, 0
      %v642 = vmul.f32 %v609, %v641
      %v643 = vmul.f32 %v614, %v641
      %v644 = vmul.f32 %v619, %v641
      %v645 = vmul.f32 %v624, %v641
      %v646 = vmul.f32 %v629, %v641
      %v647 = vmul.f32 %v634, %v641
      %v648 = vmul.f32 %v639, %v641
      %v649 = vadd.f32 %v590, %v642
      %v650 = vadd.f32 %v591, %v643
      %v651 = vadd.f32 %v592, %v644
      %v652 = vadd.f32 %v593, %v645
      %v653 = vadd.f32 %v594, %v646
      %v654 = vadd.f32 %v595, %v647
      %v655 = vadd.f32 %v596, %v648
      %v656 = vld [vmem:[%s604 + $0x1] sm:$0x1]
      %657 = vset.pattern.permute.xlu0 1
      %658 = vperm.xlu0 %657, %v597
      %v659 = vpop.permute.xlu0 %658
      %661 = vset.pattern.permute.xlu0 1
      %662 = vperm.xlu0 %661, %v598
      %v663 = vpop.permute.xlu0 %662
      %665 = vset.pattern.permute.xlu0 1
      %666 = vperm.xlu0 %665, %v599
      %v667 = vpop.permute.xlu0 %666
      %669 = vset.pattern.permute.xlu0 1
      %670 = vperm.xlu0 %669, %v600
      %v671 = vpop.permute.xlu0 %670
      %673 = vset.pattern.permute.xlu0 1
      %674 = vperm.xlu0 %673, %v601
      %v675 = vpop.permute.xlu0 %674
      %677 = vset.pattern.permute.xlu0 1
      %678 = vperm.xlu0 %677, %v602
      %v679 = vpop.permute.xlu0 %678
      %681 = vset.pattern.permute.xlu0 1
      %682 = vperm.xlu0 %681, %v603
      %v683 = vpop.permute.xlu0 %682
      %v685 = vperm.slane %v656, 0
      %v686 = vmul.f32 %v659, %v685
      %v687 = vmul.f32 %v663, %v685
      %v688 = vmul.f32 %v667, %v685
      %v689 = vmul.f32 %v671, %v685
      %v690 = vmul.f32 %v675, %v685
      %v691 = vmul.f32 %v679, %v685
      %v692 = vmul.f32 %v683, %v685
      %v693 = vadd.f32 %v649, %v686
      %v694 = vadd.f32 %v650, %v687
      %v695 = vadd.f32 %v651, %v688
      %v696 = vadd.f32 %v652, %v689
      %v697 = vadd.f32 %v653, %v690
      %v698 = vadd.f32 %v654, %v691
      %v699 = vadd.f32 %v655, %v692
      %v700 = vld [vmem:[%s604 + $0x2] sm:$0x1]
      %701 = vset.pattern.permute.xlu0 2
      %702 = vperm.xlu0 %701, %v597
      %v703 = vpop.permute.xlu0 %702
      %705 = vset.pattern.permute.xlu0 2
      %706 = vperm.xlu0 %705, %v598
      %v707 = vpop.permute.xlu0 %706
      %709 = vset.pattern.permute.xlu0 2
      %710 = vperm.xlu0 %709, %v599
      %v711 = vpop.permute.xlu0 %710
      %713 = vset.pattern.permute.xlu0 2
      %714 = vperm.xlu0 %713, %v600
      %v715 = vpop.permute.xlu0 %714
      %717 = vset.pattern.permute.xlu0 2
      %718 = vperm.xlu0 %717, %v601
      %v719 = vpop.permute.xlu0 %718
      %721 = vset.pattern.permute.xlu0 2
      %722 = vperm.xlu0 %721, %v602
      %v723 = vpop.permute.xlu0 %722
      %725 = vset.pattern.permute.xlu0 2
      %726 = vperm.xlu0 %725, %v603
      %v727 = vpop.permute.xlu0 %726
      %v729 = vperm.slane %v700, 0
      %v730 = vmul.f32 %v703, %v729
      %v731 = vmul.f32 %v707, %v729
      %v732 = vmul.f32 %v711, %v729
      %v733 = vmul.f32 %v715, %v729
      %v734 = vmul.f32 %v719, %v729
      %v735 = vmul.f32 %v723, %v729
      %v736 = vmul.f32 %v727, %v729
      %v737 = vadd.f32 %v693, %v730
      %v738 = vadd.f32 %v694, %v731
      %v739 = vadd.f32 %v695, %v732
      %v740 = vadd.f32 %v696, %v733
      %v741 = vadd.f32 %v697, %v734
      %v742 = vadd.f32 %v698, %v735
      %v743 = vadd.f32 %v699, %v736
      %v744 = vld [vmem:[%s604 + $0x3] sm:$0x1]
      %745 = vset.pattern.permute.xlu0 3
      %746 = vperm.xlu0 %745, %v597
      %v747 = vpop.permute.xlu0 %746
      %749 = vset.pattern.permute.xlu0 3
      %750 = vperm.xlu0 %749, %v598
      %v751 = vpop.permute.xlu0 %750
      %753 = vset.pattern.permute.xlu0 3
      %754 = vperm.xlu0 %753, %v599
      %v755 = vpop.permute.xlu0 %754
      %757 = vset.pattern.permute.xlu0 3
      %758 = vperm.xlu0 %757, %v600
      %v759 = vpop.permute.xlu0 %758
      %761 = vset.pattern.permute.xlu0 3
      %762 = vperm.xlu0 %761, %v601
      %v763 = vpop.permute.xlu0 %762
      %765 = vset.pattern.permute.xlu0 3
      %766 = vperm.xlu0 %765, %v602
      %v767 = vpop.permute.xlu0 %766
      %769 = vset.pattern.permute.xlu0 3
      %770 = vperm.xlu0 %769, %v603
      %v771 = vpop.permute.xlu0 %770
      %v773 = vperm.slane %v744, 0
      %v774 = vmul.f32 %v747, %v773
      %v775 = vmul.f32 %v751, %v773
      %v776 = vmul.f32 %v755, %v773
      %v777 = vmul.f32 %v759, %v773
      %v778 = vmul.f32 %v763, %v773
      %v779 = vmul.f32 %v767, %v773
      %v780 = vmul.f32 %v771, %v773
      %v781 = vadd.f32 %v737, %v774
      %v782 = vadd.f32 %v738, %v775
      %v783 = vadd.f32 %v739, %v776
      %v784 = vadd.f32 %v740, %v777
      %v785 = vadd.f32 %v741, %v778
      %v786 = vadd.f32 %v742, %v779
      %v787 = vadd.f32 %v743, %v780
      %s788 = scalar_lea.vmem %s207, 128
      %v789 = vld [vmem:[%s788] sm:$0x7f]
      %v790 = vld [vmem:[%s788 + $0x8] sm:$0x7f]
      %v791 = vld [vmem:[%s788 + $0x10] sm:$0x7f]
      %v792 = vld [vmem:[%s788 + $0x18] sm:$0x7f]
      %v793 = vld [vmem:[%s788 + $0x20] sm:$0x7f]
      %v794 = vld [vmem:[%s788 + $0x28] sm:$0x7f]
      %v795 = vld [vmem:[%s788 + $0x30] sm:$0x7f]
      %s796 = scalar_lea.vmem %s1, 12
      %v797 = vld [vmem:[%s796] sm:$0x1]
      %799 = vset.pattern.permute.xlu0 0
      %800 = vperm.xlu0 %799, %v789
      %v801 = vpop.permute.xlu0 %800
      %804 = vset.pattern.permute.xlu0 0
      %805 = vperm.xlu0 %804, %v790
      %v806 = vpop.permute.xlu0 %805
      %809 = vset.pattern.permute.xlu0 0
      %810 = vperm.xlu0 %809, %v791
      %v811 = vpop.permute.xlu0 %810
      %814 = vset.pattern.permute.xlu0 0
      %815 = vperm.xlu0 %814, %v792
      %v816 = vpop.permute.xlu0 %815
      %819 = vset.pattern.permute.xlu0 0
      %820 = vperm.xlu0 %819, %v793
      %v821 = vpop.permute.xlu0 %820
      %824 = vset.pattern.permute.xlu0 0
      %825 = vperm.xlu0 %824, %v794
      %v826 = vpop.permute.xlu0 %825
      %829 = vset.pattern.permute.xlu0 0
      %830 = vperm.xlu0 %829, %v795
      %v831 = vpop.permute.xlu0 %830
      %v833 = vperm.slane %v797, 0
      %v834 = vmul.f32 %v801, %v833
      %v835 = vmul.f32 %v806, %v833
      %v836 = vmul.f32 %v811, %v833
      %v837 = vmul.f32 %v816, %v833
      %v838 = vmul.f32 %v821, %v833
      %v839 = vmul.f32 %v826, %v833
      %v840 = vmul.f32 %v831, %v833
      %v841 = vadd.f32 %v781, %v834
      %v842 = vadd.f32 %v782, %v835
      %v843 = vadd.f32 %v783, %v836
      %v844 = vadd.f32 %v784, %v837
      %v845 = vadd.f32 %v785, %v838
      %v846 = vadd.f32 %v786, %v839
      %v847 = vadd.f32 %v787, %v840
      %v848 = vld [vmem:[%s796 + $0x1] sm:$0x1]
      %849 = vset.pattern.permute.xlu0 1
      %850 = vperm.xlu0 %849, %v789
      %v851 = vpop.permute.xlu0 %850
      %853 = vset.pattern.permute.xlu0 1
      %854 = vperm.xlu0 %853, %v790
      %v855 = vpop.permute.xlu0 %854
      %857 = vset.pattern.permute.xlu0 1
      %858 = vperm.xlu0 %857, %v791
      %v859 = vpop.permute.xlu0 %858
      %861 = vset.pattern.permute.xlu0 1
      %862 = vperm.xlu0 %861, %v792
      %v863 = vpop.permute.xlu0 %862
      %865 = vset.pattern.permute.xlu0 1
      %866 = vperm.xlu0 %865, %v793
      %v867 = vpop.permute.xlu0 %866
      %869 = vset.pattern.permute.xlu0 1
      %870 = vperm.xlu0 %869, %v794
      %v871 = vpop.permute.xlu0 %870
      %873 = vset.pattern.permute.xlu0 1
      %874 = vperm.xlu0 %873, %v795
      %v875 = vpop.permute.xlu0 %874
      %v877 = vperm.slane %v848, 0
      %v878 = vmul.f32 %v851, %v877
      %v879 = vmul.f32 %v855, %v877
      %v880 = vmul.f32 %v859, %v877
      %v881 = vmul.f32 %v863, %v877
      %v882 = vmul.f32 %v867, %v877
      %v883 = vmul.f32 %v871, %v877
      %v884 = vmul.f32 %v875, %v877
      %v885 = vadd.f32 %v841, %v878
      %v886 = vadd.f32 %v842, %v879
      %v887 = vadd.f32 %v843, %v880
      %v888 = vadd.f32 %v844, %v881
      %v889 = vadd.f32 %v845, %v882
      %v890 = vadd.f32 %v846, %v883
      %v891 = vadd.f32 %v847, %v884
      %v892 = vld [vmem:[%s796 + $0x2] sm:$0x1]
      %893 = vset.pattern.permute.xlu0 2
      %894 = vperm.xlu0 %893, %v789
      %v895 = vpop.permute.xlu0 %894
      %897 = vset.pattern.permute.xlu0 2
      %898 = vperm.xlu0 %897, %v790
      %v899 = vpop.permute.xlu0 %898
      %901 = vset.pattern.permute.xlu0 2
      %902 = vperm.xlu0 %901, %v791
      %v903 = vpop.permute.xlu0 %902
      %905 = vset.pattern.permute.xlu0 2
      %906 = vperm.xlu0 %905, %v792
      %v907 = vpop.permute.xlu0 %906
      %909 = vset.pattern.permute.xlu0 2
      %910 = vperm.xlu0 %909, %v793
      %v911 = vpop.permute.xlu0 %910
      %913 = vset.pattern.permute.xlu0 2
      %914 = vperm.xlu0 %913, %v794
      %v915 = vpop.permute.xlu0 %914
      %917 = vset.pattern.permute.xlu0 2
      %918 = vperm.xlu0 %917, %v795
      %v919 = vpop.permute.xlu0 %918
      %v921 = vperm.slane %v892, 0
      %v922 = vmul.f32 %v895, %v921
      %v923 = vmul.f32 %v899, %v921
      %v924 = vmul.f32 %v903, %v921
      %v925 = vmul.f32 %v907, %v921
      %v926 = vmul.f32 %v911, %v921
      %v927 = vmul.f32 %v915, %v921
      %v928 = vmul.f32 %v919, %v921
      %v929 = vadd.f32 %v885, %v922
      %v930 = vadd.f32 %v886, %v923
      %v931 = vadd.f32 %v887, %v924
      %v932 = vadd.f32 %v888, %v925
      %v933 = vadd.f32 %v889, %v926
      %v934 = vadd.f32 %v890, %v927
      %v935 = vadd.f32 %v891, %v928
      %v936 = vld [vmem:[%s796 + $0x3] sm:$0x1]
      %937 = vset.pattern.permute.xlu0 3
      %938 = vperm.xlu0 %937, %v789
      %v939 = vpop.permute.xlu0 %938
      %941 = vset.pattern.permute.xlu0 3
      %942 = vperm.xlu0 %941, %v790
      %v943 = vpop.permute.xlu0 %942
      %945 = vset.pattern.permute.xlu0 3
      %946 = vperm.xlu0 %945, %v791
      %v947 = vpop.permute.xlu0 %946
      %949 = vset.pattern.permute.xlu0 3
      %950 = vperm.xlu0 %949, %v792
      %v951 = vpop.permute.xlu0 %950
      %953 = vset.pattern.permute.xlu0 3
      %954 = vperm.xlu0 %953, %v793
      %v955 = vpop.permute.xlu0 %954
      %957 = vset.pattern.permute.xlu0 3
      %958 = vperm.xlu0 %957, %v794
      %v959 = vpop.permute.xlu0 %958
      %961 = vset.pattern.permute.xlu0 3
      %962 = vperm.xlu0 %961, %v795
      %v963 = vpop.permute.xlu0 %962
      %v965 = vperm.slane %v936, 0
      %v966 = vmul.f32 %v939, %v965
      %v967 = vmul.f32 %v943, %v965
      %v968 = vmul.f32 %v947, %v965
      %v969 = vmul.f32 %v951, %v965
      %v970 = vmul.f32 %v955, %v965
      %v971 = vmul.f32 %v959, %v965
      %v972 = vmul.f32 %v963, %v965
      %v973 = vadd.f32 %v929, %v966
      %v974 = vadd.f32 %v930, %v967
      %v975 = vadd.f32 %v931, %v968
      %v976 = vadd.f32 %v932, %v969
      %v977 = vadd.f32 %v933, %v970
      %v978 = vadd.f32 %v934, %v971
      %v979 = vadd.f32 %v935, %v972
      %s980 = scalar_lea.vmem %s207, 192
      %v981 = vld [vmem:[%s980] sm:$0x7f]
      %v982 = vld [vmem:[%s980 + $0x8] sm:$0x7f]
      %v983 = vld [vmem:[%s980 + $0x10] sm:$0x7f]
      %v984 = vld [vmem:[%s980 + $0x18] sm:$0x7f]
      %v985 = vld [vmem:[%s980 + $0x20] sm:$0x7f]
      %v986 = vld [vmem:[%s980 + $0x28] sm:$0x7f]
      %v987 = vld [vmem:[%s980 + $0x30] sm:$0x7f]
      %s988 = scalar_lea.vmem %s1, 16
      %v989 = vld [vmem:[%s988] sm:$0x1]
      %991 = vset.pattern.permute.xlu0 0
      %992 = vperm.xlu0 %991, %v981
      %v993 = vpop.permute.xlu0 %992
      %996 = vset.pattern.permute.xlu0 0
      %997 = vperm.xlu0 %996, %v982
      %v998 = vpop.permute.xlu0 %997
      %1001 = vset.pattern.permute.xlu0 0
      %1002 = vperm.xlu0 %1001, %v983
      %v1003 = vpop.permute.xlu0 %1002
      %1006 = vset.pattern.permute.xlu0 0
      %1007 = vperm.xlu0 %1006, %v984
      %v1008 = vpop.permute.xlu0 %1007
      %1011 = vset.pattern.permute.xlu0 0
      %1012 = vperm.xlu0 %1011, %v985
      %v1013 = vpop.permute.xlu0 %1012
      %1016 = vset.pattern.permute.xlu0 0
      %1017 = vperm.xlu0 %1016, %v986
      %v1018 = vpop.permute.xlu0 %1017
      %1021 = vset.pattern.permute.xlu0 0
      %1022 = vperm.xlu0 %1021, %v987
      %v1023 = vpop.permute.xlu0 %1022
      %v1025 = vperm.slane %v989, 0
      %v1026 = vmul.f32 %v993, %v1025
      %v1027 = vmul.f32 %v998, %v1025
      %v1028 = vmul.f32 %v1003, %v1025
      %v1029 = vmul.f32 %v1008, %v1025
      %v1030 = vmul.f32 %v1013, %v1025
      %v1031 = vmul.f32 %v1018, %v1025
      %v1032 = vmul.f32 %v1023, %v1025
      %v1033 = vadd.f32 %v973, %v1026
      %v1034 = vadd.f32 %v974, %v1027
      %v1035 = vadd.f32 %v975, %v1028
      %v1036 = vadd.f32 %v976, %v1029
      %v1037 = vadd.f32 %v977, %v1030
      %v1038 = vadd.f32 %v978, %v1031
      %v1039 = vadd.f32 %v979, %v1032
      %v1040 = vld [vmem:[%s988 + $0x1] sm:$0x1]
      %1041 = vset.pattern.permute.xlu0 1
      %1042 = vperm.xlu0 %1041, %v981
      %v1043 = vpop.permute.xlu0 %1042
      %1045 = vset.pattern.permute.xlu0 1
      %1046 = vperm.xlu0 %1045, %v982
      %v1047 = vpop.permute.xlu0 %1046
      %1049 = vset.pattern.permute.xlu0 1
      %1050 = vperm.xlu0 %1049, %v983
      %v1051 = vpop.permute.xlu0 %1050
      %1053 = vset.pattern.permute.xlu0 1
      %1054 = vperm.xlu0 %1053, %v984
      %v1055 = vpop.permute.xlu0 %1054
      %1057 = vset.pattern.permute.xlu0 1
      %1058 = vperm.xlu0 %1057, %v985
      %v1059 = vpop.permute.xlu0 %1058
      %1061 = vset.pattern.permute.xlu0 1
      %1062 = vperm.xlu0 %1061, %v986
      %v1063 = vpop.permute.xlu0 %1062
      %1065 = vset.pattern.permute.xlu0 1
      %1066 = vperm.xlu0 %1065, %v987
      %v1067 = vpop.permute.xlu0 %1066
      %v1069 = vperm.slane %v1040, 0
      %v1070 = vmul.f32 %v1043, %v1069
      %v1071 = vmul.f32 %v1047, %v1069
      %v1072 = vmul.f32 %v1051, %v1069
      %v1073 = vmul.f32 %v1055, %v1069
      %v1074 = vmul.f32 %v1059, %v1069
      %v1075 = vmul.f32 %v1063, %v1069
      %v1076 = vmul.f32 %v1067, %v1069
      %v1077 = vadd.f32 %v1033, %v1070
      %v1078 = vadd.f32 %v1034, %v1071
      %v1079 = vadd.f32 %v1035, %v1072
      %v1080 = vadd.f32 %v1036, %v1073
      %v1081 = vadd.f32 %v1037, %v1074
      %v1082 = vadd.f32 %v1038, %v1075
      %v1083 = vadd.f32 %v1039, %v1076
      %v1084 = vld [vmem:[%s988 + $0x2] sm:$0x1]
      %1085 = vset.pattern.permute.xlu0 2
      %1086 = vperm.xlu0 %1085, %v981
      %v1087 = vpop.permute.xlu0 %1086
      %1089 = vset.pattern.permute.xlu0 2
      %1090 = vperm.xlu0 %1089, %v982
      %v1091 = vpop.permute.xlu0 %1090
      %1093 = vset.pattern.permute.xlu0 2
      %1094 = vperm.xlu0 %1093, %v983
      %v1095 = vpop.permute.xlu0 %1094
      %1097 = vset.pattern.permute.xlu0 2
      %1098 = vperm.xlu0 %1097, %v984
      %v1099 = vpop.permute.xlu0 %1098
      %1101 = vset.pattern.permute.xlu0 2
      %1102 = vperm.xlu0 %1101, %v985
      %v1103 = vpop.permute.xlu0 %1102
      %1105 = vset.pattern.permute.xlu0 2
      %1106 = vperm.xlu0 %1105, %v986
      %v1107 = vpop.permute.xlu0 %1106
      %1109 = vset.pattern.permute.xlu0 2
      %1110 = vperm.xlu0 %1109, %v987
      %v1111 = vpop.permute.xlu0 %1110
      %v1113 = vperm.slane %v1084, 0
      %v1114 = vmul.f32 %v1087, %v1113
      %v1115 = vmul.f32 %v1091, %v1113
      %v1116 = vmul.f32 %v1095, %v1113
      %v1117 = vmul.f32 %v1099, %v1113
      %v1118 = vmul.f32 %v1103, %v1113
      %v1119 = vmul.f32 %v1107, %v1113
      %v1120 = vmul.f32 %v1111, %v1113
      %v1121 = vadd.f32 %v1077, %v1114
      %v1122 = vadd.f32 %v1078, %v1115
      %v1123 = vadd.f32 %v1079, %v1116
      %v1124 = vadd.f32 %v1080, %v1117
      %v1125 = vadd.f32 %v1081, %v1118
      %v1126 = vadd.f32 %v1082, %v1119
      %v1127 = vadd.f32 %v1083, %v1120
      %v1128 = vld [vmem:[%s988 + $0x3] sm:$0x1]
      %1129 = vset.pattern.permute.xlu0 3
      %1130 = vperm.xlu0 %1129, %v981
      %v1131 = vpop.permute.xlu0 %1130
      %1133 = vset.pattern.permute.xlu0 3
      %1134 = vperm.xlu0 %1133, %v982
      %v1135 = vpop.permute.xlu0 %1134
      %1137 = vset.pattern.permute.xlu0 3
      %1138 = vperm.xlu0 %1137, %v983
      %v1139 = vpop.permute.xlu0 %1138
      %1141 = vset.pattern.permute.xlu0 3
      %1142 = vperm.xlu0 %1141, %v984
      %v1143 = vpop.permute.xlu0 %1142
      %1145 = vset.pattern.permute.xlu0 3
      %1146 = vperm.xlu0 %1145, %v985
      %v1147 = vpop.permute.xlu0 %1146
      %1149 = vset.pattern.permute.xlu0 3
      %1150 = vperm.xlu0 %1149, %v986
      %v1151 = vpop.permute.xlu0 %1150
      %1153 = vset.pattern.permute.xlu0 3
      %1154 = vperm.xlu0 %1153, %v987
      %v1155 = vpop.permute.xlu0 %1154
      %v1157 = vperm.slane %v1128, 0
      %v1158 = vmul.f32 %v1131, %v1157
      %v1159 = vmul.f32 %v1135, %v1157
      %v1160 = vmul.f32 %v1139, %v1157
      %v1161 = vmul.f32 %v1143, %v1157
      %v1162 = vmul.f32 %v1147, %v1157
      %v1163 = vmul.f32 %v1151, %v1157
      %v1164 = vmul.f32 %v1155, %v1157
      %v1165 = vadd.f32 %v1121, %v1158
      %v1166 = vadd.f32 %v1122, %v1159
      %v1167 = vadd.f32 %v1123, %v1160
      %v1168 = vadd.f32 %v1124, %v1161
      %v1169 = vadd.f32 %v1125, %v1162
      %v1170 = vadd.f32 %v1126, %v1163
      %v1171 = vadd.f32 %v1127, %v1164
      %v1172 = vld [vmem:[%s788 + $0x1] sm:$0x7f]
      %v1173 = vld [vmem:[%s788 + $0x9] sm:$0x7f]
      %v1174 = vld [vmem:[%s788 + $0x11] sm:$0x7f]
      %v1175 = vld [vmem:[%s788 + $0x19] sm:$0x7f]
      %v1176 = vld [vmem:[%s788 + $0x21] sm:$0x7f]
      %v1177 = vld [vmem:[%s788 + $0x29] sm:$0x7f]
      %v1178 = vld [vmem:[%s788 + $0x31] sm:$0x7f]
      %s1179 = scalar_lea.vmem %s1, 20
      %v1180 = vld [vmem:[%s1179] sm:$0x1]
      %1182 = vset.pattern.permute.xlu0 0
      %1183 = vperm.xlu0 %1182, %v1172
      %v1184 = vpop.permute.xlu0 %1183
      %1187 = vset.pattern.permute.xlu0 0
      %1188 = vperm.xlu0 %1187, %v1173
      %v1189 = vpop.permute.xlu0 %1188
      %1192 = vset.pattern.permute.xlu0 0
      %1193 = vperm.xlu0 %1192, %v1174
      %v1194 = vpop.permute.xlu0 %1193
      %1197 = vset.pattern.permute.xlu0 0
      %1198 = vperm.xlu0 %1197, %v1175
      %v1199 = vpop.permute.xlu0 %1198
      %1202 = vset.pattern.permute.xlu0 0
      %1203 = vperm.xlu0 %1202, %v1176
      %v1204 = vpop.permute.xlu0 %1203
      %1207 = vset.pattern.permute.xlu0 0
      %1208 = vperm.xlu0 %1207, %v1177
      %v1209 = vpop.permute.xlu0 %1208
      %1212 = vset.pattern.permute.xlu0 0
      %1213 = vperm.xlu0 %1212, %v1178
      %v1214 = vpop.permute.xlu0 %1213
      %v1216 = vperm.slane %v1180, 0
      %v1217 = vmul.f32 %v1184, %v1216
      %v1218 = vmul.f32 %v1189, %v1216
      %v1219 = vmul.f32 %v1194, %v1216
      %v1220 = vmul.f32 %v1199, %v1216
      %v1221 = vmul.f32 %v1204, %v1216
      %v1222 = vmul.f32 %v1209, %v1216
      %v1223 = vmul.f32 %v1214, %v1216
      %v1224 = vadd.f32 %v1165, %v1217
      %v1225 = vadd.f32 %v1166, %v1218
      %v1226 = vadd.f32 %v1167, %v1219
      %v1227 = vadd.f32 %v1168, %v1220
      %v1228 = vadd.f32 %v1169, %v1221
      %v1229 = vadd.f32 %v1170, %v1222
      %v1230 = vadd.f32 %v1171, %v1223
      %v1231 = vld [vmem:[%s1179 + $0x1] sm:$0x1]
      %1232 = vset.pattern.permute.xlu0 1
      %1233 = vperm.xlu0 %1232, %v1172
      %v1234 = vpop.permute.xlu0 %1233
      %1236 = vset.pattern.permute.xlu0 1
      %1237 = vperm.xlu0 %1236, %v1173
      %v1238 = vpop.permute.xlu0 %1237
      %1240 = vset.pattern.permute.xlu0 1
      %1241 = vperm.xlu0 %1240, %v1174
      %v1242 = vpop.permute.xlu0 %1241
      %1244 = vset.pattern.permute.xlu0 1
      %1245 = vperm.xlu0 %1244, %v1175
      %v1246 = vpop.permute.xlu0 %1245
      %1248 = vset.pattern.permute.xlu0 1
      %1249 = vperm.xlu0 %1248, %v1176
      %v1250 = vpop.permute.xlu0 %1249
      %1252 = vset.pattern.permute.xlu0 1
      %1253 = vperm.xlu0 %1252, %v1177
      %v1254 = vpop.permute.xlu0 %1253
      %1256 = vset.pattern.permute.xlu0 1
      %1257 = vperm.xlu0 %1256, %v1178
      %v1258 = vpop.permute.xlu0 %1257
      %v1260 = vperm.slane %v1231, 0
      %v1261 = vmul.f32 %v1234, %v1260
      %v1262 = vmul.f32 %v1238, %v1260
      %v1263 = vmul.f32 %v1242, %v1260
      %v1264 = vmul.f32 %v1246, %v1260
      %v1265 = vmul.f32 %v1250, %v1260
      %v1266 = vmul.f32 %v1254, %v1260
      %v1267 = vmul.f32 %v1258, %v1260
      %v1268 = vadd.f32 %v1224, %v1261
      %v1269 = vadd.f32 %v1225, %v1262
      %v1270 = vadd.f32 %v1226, %v1263
      %v1271 = vadd.f32 %v1227, %v1264
      %v1272 = vadd.f32 %v1228, %v1265
      %v1273 = vadd.f32 %v1229, %v1266
      %v1274 = vadd.f32 %v1230, %v1267
      %v1275 = vld [vmem:[%s1179 + $0x2] sm:$0x1]
      %1276 = vset.pattern.permute.xlu0 2
      %1277 = vperm.xlu0 %1276, %v1172
      %v1278 = vpop.permute.xlu0 %1277
      %1280 = vset.pattern.permute.xlu0 2
      %1281 = vperm.xlu0 %1280, %v1173
      %v1282 = vpop.permute.xlu0 %1281
      %1284 = vset.pattern.permute.xlu0 2
      %1285 = vperm.xlu0 %1284, %v1174
      %v1286 = vpop.permute.xlu0 %1285
      %1288 = vset.pattern.permute.xlu0 2
      %1289 = vperm.xlu0 %1288, %v1175
      %v1290 = vpop.permute.xlu0 %1289
      %1292 = vset.pattern.permute.xlu0 2
      %1293 = vperm.xlu0 %1292, %v1176
      %v1294 = vpop.permute.xlu0 %1293
      %1296 = vset.pattern.permute.xlu0 2
      %1297 = vperm.xlu0 %1296, %v1177
      %v1298 = vpop.permute.xlu0 %1297
      %1300 = vset.pattern.permute.xlu0 2
      %1301 = vperm.xlu0 %1300, %v1178
      %v1302 = vpop.permute.xlu0 %1301
      %v1304 = vperm.slane %v1275, 0
      %v1305 = vmul.f32 %v1278, %v1304
      %v1306 = vmul.f32 %v1282, %v1304
      %v1307 = vmul.f32 %v1286, %v1304
      %v1308 = vmul.f32 %v1290, %v1304
      %v1309 = vmul.f32 %v1294, %v1304
      %v1310 = vmul.f32 %v1298, %v1304
      %v1311 = vmul.f32 %v1302, %v1304
      %v1312 = vadd.f32 %v1268, %v1305
      %v1313 = vadd.f32 %v1269, %v1306
      %v1314 = vadd.f32 %v1270, %v1307
      %v1315 = vadd.f32 %v1271, %v1308
      %v1316 = vadd.f32 %v1272, %v1309
      %v1317 = vadd.f32 %v1273, %v1310
      %v1318 = vadd.f32 %v1274, %v1311
      %v1319 = vld [vmem:[%s1179 + $0x3] sm:$0x1]
      %1320 = vset.pattern.permute.xlu0 3
      %1321 = vperm.xlu0 %1320, %v1172
      %v1322 = vpop.permute.xlu0 %1321
      %1324 = vset.pattern.permute.xlu0 3
      %1325 = vperm.xlu0 %1324, %v1173
      %v1326 = vpop.permute.xlu0 %1325
      %1328 = vset.pattern.permute.xlu0 3
      %1329 = vperm.xlu0 %1328, %v1174
      %v1330 = vpop.permute.xlu0 %1329
      %1332 = vset.pattern.permute.xlu0 3
      %1333 = vperm.xlu0 %1332, %v1175
      %v1334 = vpop.permute.xlu0 %1333
      %1336 = vset.pattern.permute.xlu0 3
      %1337 = vperm.xlu0 %1336, %v1176
      %v1338 = vpop.permute.xlu0 %1337
      %1340 = vset.pattern.permute.xlu0 3
      %1341 = vperm.xlu0 %1340, %v1177
      %v1342 = vpop.permute.xlu0 %1341
      %1344 = vset.pattern.permute.xlu0 3
      %1345 = vperm.xlu0 %1344, %v1178
      %v1346 = vpop.permute.xlu0 %1345
      %v1348 = vperm.slane %v1319, 0
      %v1349 = vmul.f32 %v1322, %v1348
      %v1350 = vmul.f32 %v1326, %v1348
      %v1351 = vmul.f32 %v1330, %v1348
      %v1352 = vmul.f32 %v1334, %v1348
      %v1353 = vmul.f32 %v1338, %v1348
      %v1354 = vmul.f32 %v1342, %v1348
      %v1355 = vmul.f32 %v1346, %v1348
      %v1356 = vadd.f32 %v1312, %v1349
      %v1357 = vadd.f32 %v1313, %v1350
      %v1358 = vadd.f32 %v1314, %v1351
      %v1359 = vadd.f32 %v1315, %v1352
      %v1360 = vadd.f32 %v1316, %v1353
      %v1361 = vadd.f32 %v1317, %v1354
      %v1362 = vadd.f32 %v1318, %v1355
      %s1363 = scalar_lea.vmem %s207, 8
      %v1364 = vld [vmem:[%s1363] sm:$0x7f]
      %v1365 = vld [vmem:[%s1363 + $0x8] sm:$0x7f]
      %v1366 = vld [vmem:[%s1363 + $0x10] sm:$0x7f]
      %v1367 = vld [vmem:[%s1363 + $0x18] sm:$0x7f]
      %v1368 = vld [vmem:[%s1363 + $0x20] sm:$0x7f]
      %v1369 = vld [vmem:[%s1363 + $0x28] sm:$0x7f]
      %v1370 = vld [vmem:[%s1363 + $0x30] sm:$0x7f]
      %s1371 = scalar_lea.vmem %s1, 24
      %v1372 = vld [vmem:[%s1371] sm:$0x1]
      %1374 = vset.pattern.permute.xlu0 0
      %1375 = vperm.xlu0 %1374, %v1364
      %v1376 = vpop.permute.xlu0 %1375
      %1379 = vset.pattern.permute.xlu0 0
      %1380 = vperm.xlu0 %1379, %v1365
      %v1381 = vpop.permute.xlu0 %1380
      %1384 = vset.pattern.permute.xlu0 0
      %1385 = vperm.xlu0 %1384, %v1366
      %v1386 = vpop.permute.xlu0 %1385
      %1389 = vset.pattern.permute.xlu0 0
      %1390 = vperm.xlu0 %1389, %v1367
      %v1391 = vpop.permute.xlu0 %1390
      %1394 = vset.pattern.permute.xlu0 0
      %1395 = vperm.xlu0 %1394, %v1368
      %v1396 = vpop.permute.xlu0 %1395
      %1399 = vset.pattern.permute.xlu0 0
      %1400 = vperm.xlu0 %1399, %v1369
      %v1401 = vpop.permute.xlu0 %1400
      %1404 = vset.pattern.permute.xlu0 0
      %1405 = vperm.xlu0 %1404, %v1370
      %v1406 = vpop.permute.xlu0 %1405
      %v1408 = vperm.slane %v1372, 0
      %v1409 = vmul.f32 %v1376, %v1408
      %v1410 = vmul.f32 %v1381, %v1408
      %v1411 = vmul.f32 %v1386, %v1408
      %v1412 = vmul.f32 %v1391, %v1408
      %v1413 = vmul.f32 %v1396, %v1408
      %v1414 = vmul.f32 %v1401, %v1408
      %v1415 = vmul.f32 %v1406, %v1408
      %v1416 = vadd.f32 %v1356, %v1409
      %v1417 = vadd.f32 %v1357, %v1410
      %v1418 = vadd.f32 %v1358, %v1411
      %v1419 = vadd.f32 %v1359, %v1412
      %v1420 = vadd.f32 %v1360, %v1413
      %v1421 = vadd.f32 %v1361, %v1414
      %v1422 = vadd.f32 %v1362, %v1415
      %v1423 = vld [vmem:[%s1371 + $0x1] sm:$0x1]
      %1424 = vset.pattern.permute.xlu0 1
      %1425 = vperm.xlu0 %1424, %v1364
      %v1426 = vpop.permute.xlu0 %1425
      %1428 = vset.pattern.permute.xlu0 1
      %1429 = vperm.xlu0 %1428, %v1365
      %v1430 = vpop.permute.xlu0 %1429
      %1432 = vset.pattern.permute.xlu0 1
      %1433 = vperm.xlu0 %1432, %v1366
      %v1434 = vpop.permute.xlu0 %1433
      %1436 = vset.pattern.permute.xlu0 1
      %1437 = vperm.xlu0 %1436, %v1367
      %v1438 = vpop.permute.xlu0 %1437
      %1440 = vset.pattern.permute.xlu0 1
      %1441 = vperm.xlu0 %1440, %v1368
      %v1442 = vpop.permute.xlu0 %1441
      %1444 = vset.pattern.permute.xlu0 1
      %1445 = vperm.xlu0 %1444, %v1369
      %v1446 = vpop.permute.xlu0 %1445
      %1448 = vset.pattern.permute.xlu0 1
      %1449 = vperm.xlu0 %1448, %v1370
      %v1450 = vpop.permute.xlu0 %1449
      %v1452 = vperm.slane %v1423, 0
      %v1453 = vmul.f32 %v1426, %v1452
      %v1454 = vmul.f32 %v1430, %v1452
      %v1455 = vmul.f32 %v1434, %v1452
      %v1456 = vmul.f32 %v1438, %v1452
      %v1457 = vmul.f32 %v1442, %v1452
      %v1458 = vmul.f32 %v1446, %v1452
      %v1459 = vmul.f32 %v1450, %v1452
      %v1460 = vadd.f32 %v1416, %v1453
      %v1461 = vadd.f32 %v1417, %v1454
      %v1462 = vadd.f32 %v1418, %v1455
      %v1463 = vadd.f32 %v1419, %v1456
      %v1464 = vadd.f32 %v1420, %v1457
      %v1465 = vadd.f32 %v1421, %v1458
      %v1466 = vadd.f32 %v1422, %v1459
      %v1467 = vld [vmem:[%s1371 + $0x2] sm:$0x1]
      %1468 = vset.pattern.permute.xlu0 2
      %1469 = vperm.xlu0 %1468, %v1364
      %v1470 = vpop.permute.xlu0 %1469
      %1472 = vset.pattern.permute.xlu0 2
      %1473 = vperm.xlu0 %1472, %v1365
      %v1474 = vpop.permute.xlu0 %1473
      %1476 = vset.pattern.permute.xlu0 2
      %1477 = vperm.xlu0 %1476, %v1366
      %v1478 = vpop.permute.xlu0 %1477
      %1480 = vset.pattern.permute.xlu0 2
      %1481 = vperm.xlu0 %1480, %v1367
      %v1482 = vpop.permute.xlu0 %1481
      %1484 = vset.pattern.permute.xlu0 2
      %1485 = vperm.xlu0 %1484, %v1368
      %v1486 = vpop.permute.xlu0 %1485
      %1488 = vset.pattern.permute.xlu0 2
      %1489 = vperm.xlu0 %1488, %v1369
      %v1490 = vpop.permute.xlu0 %1489
      %1492 = vset.pattern.permute.xlu0 2
      %1493 = vperm.xlu0 %1492, %v1370
      %v1494 = vpop.permute.xlu0 %1493
      %v1496 = vperm.slane %v1467, 0
      %v1497 = vmul.f32 %v1470, %v1496
      %v1498 = vmul.f32 %v1474, %v1496
      %v1499 = vmul.f32 %v1478, %v1496
      %v1500 = vmul.f32 %v1482, %v1496
      %v1501 = vmul.f32 %v1486, %v1496
      %v1502 = vmul.f32 %v1490, %v1496
      %v1503 = vmul.f32 %v1494, %v1496
      %v1504 = vadd.f32 %v1460, %v1497
      %v1505 = vadd.f32 %v1461, %v1498
      %v1506 = vadd.f32 %v1462, %v1499
      %v1507 = vadd.f32 %v1463, %v1500
      %v1508 = vadd.f32 %v1464, %v1501
      %v1509 = vadd.f32 %v1465, %v1502
      %v1510 = vadd.f32 %v1466, %v1503
      %v1511 = vld [vmem:[%s1371 + $0x3] sm:$0x1]
      %1512 = vset.pattern.permute.xlu0 3
      %1513 = vperm.xlu0 %1512, %v1364
      %v1514 = vpop.permute.xlu0 %1513
      %1516 = vset.pattern.permute.xlu0 3
      %1517 = vperm.xlu0 %1516, %v1365
      %v1518 = vpop.permute.xlu0 %1517
      %1520 = vset.pattern.permute.xlu0 3
      %1521 = vperm.xlu0 %1520, %v1366
      %v1522 = vpop.permute.xlu0 %1521
      %1524 = vset.pattern.permute.xlu0 3
      %1525 = vperm.xlu0 %1524, %v1367
      %v1526 = vpop.permute.xlu0 %1525
      %1528 = vset.pattern.permute.xlu0 3
      %1529 = vperm.xlu0 %1528, %v1368
      %v1530 = vpop.permute.xlu0 %1529
      %1532 = vset.pattern.permute.xlu0 3
      %1533 = vperm.xlu0 %1532, %v1369
      %v1534 = vpop.permute.xlu0 %1533
      %1536 = vset.pattern.permute.xlu0 3
      %1537 = vperm.xlu0 %1536, %v1370
      %v1538 = vpop.permute.xlu0 %1537
      %v1540 = vperm.slane %v1511, 0
      %v1541 = vmul.f32 %v1514, %v1540
      %v1542 = vmul.f32 %v1518, %v1540
      %v1543 = vmul.f32 %v1522, %v1540
      %v1544 = vmul.f32 %v1526, %v1540
      %v1545 = vmul.f32 %v1530, %v1540
      %v1546 = vmul.f32 %v1534, %v1540
      %v1547 = vmul.f32 %v1538, %v1540
      %v1548 = vadd.f32 %v1504, %v1541
      %v1549 = vadd.f32 %v1505, %v1542
      %v1550 = vadd.f32 %v1506, %v1543
      %v1551 = vadd.f32 %v1507, %v1544
      %v1552 = vadd.f32 %v1508, %v1545
      %v1553 = vadd.f32 %v1509, %v1546
      %v1554 = vadd.f32 %v1510, %v1547
      %s1555 = scalar_lea.vmem %s207, 72
      %v1556 = vld [vmem:[%s1555] sm:$0x7f]
      %v1557 = vld [vmem:[%s1555 + $0x8] sm:$0x7f]
      %v1558 = vld [vmem:[%s1555 + $0x10] sm:$0x7f]
      %v1559 = vld [vmem:[%s1555 + $0x18] sm:$0x7f]
      %v1560 = vld [vmem:[%s1555 + $0x20] sm:$0x7f]
      %v1561 = vld [vmem:[%s1555 + $0x28] sm:$0x7f]
      %v1562 = vld [vmem:[%s1555 + $0x30] sm:$0x7f]
      %s1563 = scalar_lea.vmem %s1, 28
      %v1564 = vld [vmem:[%s1563] sm:$0x1]
      %1566 = vset.pattern.permute.xlu0 0
      %1567 = vperm.xlu0 %1566, %v1556
      %v1568 = vpop.permute.xlu0 %1567
      %1571 = vset.pattern.permute.xlu0 0
      %1572 = vperm.xlu0 %1571, %v1557
      %v1573 = vpop.permute.xlu0 %1572
      %1576 = vset.pattern.permute.xlu0 0
      %1577 = vperm.xlu0 %1576, %v1558
      %v1578 = vpop.permute.xlu0 %1577
      %1581 = vset.pattern.permute.xlu0 0
      %1582 = vperm.xlu0 %1581, %v1559
      %v1583 = vpop.permute.xlu0 %1582
      %1586 = vset.pattern.permute.xlu0 0
      %1587 = vperm.xlu0 %1586, %v1560
      %v1588 = vpop.permute.xlu0 %1587
      %1591 = vset.pattern.permute.xlu0 0
      %1592 = vperm.xlu0 %1591, %v1561
      %v1593 = vpop.permute.xlu0 %1592
      %1596 = vset.pattern.permute.xlu0 0
      %1597 = vperm.xlu0 %1596, %v1562
      %v1598 = vpop.permute.xlu0 %1597
      %v1600 = vperm.slane %v1564, 0
      %v1601 = vmul.f32 %v1568, %v1600
      %v1602 = vmul.f32 %v1573, %v1600
      %v1603 = vmul.f32 %v1578, %v1600
      %v1604 = vmul.f32 %v1583, %v1600
      %v1605 = vmul.f32 %v1588, %v1600
      %v1606 = vmul.f32 %v1593, %v1600
      %v1607 = vmul.f32 %v1598, %v1600
      %v1608 = vadd.f32 %v1548, %v1601
      %v1609 = vadd.f32 %v1549, %v1602
      %v1610 = vadd.f32 %v1550, %v1603
      %v1611 = vadd.f32 %v1551, %v1604
      %v1612 = vadd.f32 %v1552, %v1605
      %v1613 = vadd.f32 %v1553, %v1606
      %v1614 = vadd.f32 %v1554, %v1607
      %v1615 = vld [vmem:[%s1563 + $0x1] sm:$0x1]
      %1616 = vset.pattern.permute.xlu0 1
      %1617 = vperm.xlu0 %1616, %v1556
      %v1618 = vpop.permute.xlu0 %1617
      %1620 = vset.pattern.permute.xlu0 1
      %1621 = vperm.xlu0 %1620, %v1557
      %v1622 = vpop.permute.xlu0 %1621
      %1624 = vset.pattern.permute.xlu0 1
      %1625 = vperm.xlu0 %1624, %v1558
      %v1626 = vpop.permute.xlu0 %1625
      %1628 = vset.pattern.permute.xlu0 1
      %1629 = vperm.xlu0 %1628, %v1559
      %v1630 = vpop.permute.xlu0 %1629
      %1632 = vset.pattern.permute.xlu0 1
      %1633 = vperm.xlu0 %1632, %v1560
      %v1634 = vpop.permute.xlu0 %1633
      %1636 = vset.pattern.permute.xlu0 1
      %1637 = vperm.xlu0 %1636, %v1561
      %v1638 = vpop.permute.xlu0 %1637
      %1640 = vset.pattern.permute.xlu0 1
      %1641 = vperm.xlu0 %1640, %v1562
      %v1642 = vpop.permute.xlu0 %1641
      %v1644 = vperm.slane %v1615, 0
      %v1645 = vmul.f32 %v1618, %v1644
      %v1646 = vmul.f32 %v1622, %v1644
      %v1647 = vmul.f32 %v1626, %v1644
      %v1648 = vmul.f32 %v1630, %v1644
      %v1649 = vmul.f32 %v1634, %v1644
      %v1650 = vmul.f32 %v1638, %v1644
      %v1651 = vmul.f32 %v1642, %v1644
      %v1652 = vadd.f32 %v1608, %v1645
      %v1653 = vadd.f32 %v1609, %v1646
      %v1654 = vadd.f32 %v1610, %v1647
      %v1655 = vadd.f32 %v1611, %v1648
      %v1656 = vadd.f32 %v1612, %v1649
      %v1657 = vadd.f32 %v1613, %v1650
      %v1658 = vadd.f32 %v1614, %v1651
      %v1659 = vld [vmem:[%s1563 + $0x2] sm:$0x1]
      %1660 = vset.pattern.permute.xlu0 2
      %1661 = vperm.xlu0 %1660, %v1556
      %v1662 = vpop.permute.xlu0 %1661
      %1664 = vset.pattern.permute.xlu0 2
      %1665 = vperm.xlu0 %1664, %v1557
      %v1666 = vpop.permute.xlu0 %1665
      %1668 = vset.pattern.permute.xlu0 2
      %1669 = vperm.xlu0 %1668, %v1558
      %v1670 = vpop.permute.xlu0 %1669
      %1672 = vset.pattern.permute.xlu0 2
      %1673 = vperm.xlu0 %1672, %v1559
      %v1674 = vpop.permute.xlu0 %1673
      %1676 = vset.pattern.permute.xlu0 2
      %1677 = vperm.xlu0 %1676, %v1560
      %v1678 = vpop.permute.xlu0 %1677
      %1680 = vset.pattern.permute.xlu0 2
      %1681 = vperm.xlu0 %1680, %v1561
      %v1682 = vpop.permute.xlu0 %1681
      %1684 = vset.pattern.permute.xlu0 2
      %1685 = vperm.xlu0 %1684, %v1562
      %v1686 = vpop.permute.xlu0 %1685
      %v1688 = vperm.slane %v1659, 0
      %v1689 = vmul.f32 %v1662, %v1688
      %v1690 = vmul.f32 %v1666, %v1688
      %v1691 = vmul.f32 %v1670, %v1688
      %v1692 = vmul.f32 %v1674, %v1688
      %v1693 = vmul.f32 %v1678, %v1688
      %v1694 = vmul.f32 %v1682, %v1688
      %v1695 = vmul.f32 %v1686, %v1688
      %v1696 = vadd.f32 %v1652, %v1689
      %v1697 = vadd.f32 %v1653, %v1690
      %v1698 = vadd.f32 %v1654, %v1691
      %v1699 = vadd.f32 %v1655, %v1692
      %v1700 = vadd.f32 %v1656, %v1693
      %v1701 = vadd.f32 %v1657, %v1694
      %v1702 = vadd.f32 %v1658, %v1695
      %v1703 = vld [vmem:[%s1563 + $0x3] sm:$0x1]
      %1704 = vset.pattern.permute.xlu0 3
      %1705 = vperm.xlu0 %1704, %v1556
      %v1706 = vpop.permute.xlu0 %1705
      %1708 = vset.pattern.permute.xlu0 3
      %1709 = vperm.xlu0 %1708, %v1557
      %v1710 = vpop.permute.xlu0 %1709
      %1712 = vset.pattern.permute.xlu0 3
      %1713 = vperm.xlu0 %1712, %v1558
      %v1714 = vpop.permute.xlu0 %1713
      %1716 = vset.pattern.permute.xlu0 3
      %1717 = vperm.xlu0 %1716, %v1559
      %v1718 = vpop.permute.xlu0 %1717
      %1720 = vset.pattern.permute.xlu0 3
      %1721 = vperm.xlu0 %1720, %v1560
      %v1722 = vpop.permute.xlu0 %1721
      %1724 = vset.pattern.permute.xlu0 3
      %1725 = vperm.xlu0 %1724, %v1561
      %v1726 = vpop.permute.xlu0 %1725
      %1728 = vset.pattern.permute.xlu0 3
      %1729 = vperm.xlu0 %1728, %v1562
      %v1730 = vpop.permute.xlu0 %1729
      %v1732 = vperm.slane %v1703, 0
      %v1733 = vmul.f32 %v1706, %v1732
      %v1734 = vmul.f32 %v1710, %v1732
      %v1735 = vmul.f32 %v1714, %v1732
      %v1736 = vmul.f32 %v1718, %v1732
      %v1737 = vmul.f32 %v1722, %v1732
      %v1738 = vmul.f32 %v1726, %v1732
      %v1739 = vmul.f32 %v1730, %v1732
      %v1740 = vadd.f32 %v1696, %v1733
      %v1741 = vadd.f32 %v1697, %v1734
      %v1742 = vadd.f32 %v1698, %v1735
      %v1743 = vadd.f32 %v1699, %v1736
      %v1744 = vadd.f32 %v1700, %v1737
      %v1745 = vadd.f32 %v1701, %v1738
      %v1746 = vadd.f32 %v1702, %v1739
      %v1747 = vld [vmem:[%s1363 + $0x1] sm:$0x7f]
      %v1748 = vld [vmem:[%s1363 + $0x9] sm:$0x7f]
      %v1749 = vld [vmem:[%s1363 + $0x11] sm:$0x7f]
      %v1750 = vld [vmem:[%s1363 + $0x19] sm:$0x7f]
      %v1751 = vld [vmem:[%s1363 + $0x21] sm:$0x7f]
      %v1752 = vld [vmem:[%s1363 + $0x29] sm:$0x7f]
      %v1753 = vld [vmem:[%s1363 + $0x31] sm:$0x7f]
      %s1754 = scalar_lea.vmem %s1, 32
      %v1755 = vld [vmem:[%s1754] sm:$0x1]
      %1757 = vset.pattern.permute.xlu0 0
      %1758 = vperm.xlu0 %1757, %v1747
      %v1759 = vpop.permute.xlu0 %1758
      %1762 = vset.pattern.permute.xlu0 0
      %1763 = vperm.xlu0 %1762, %v1748
      %v1764 = vpop.permute.xlu0 %1763
      %1767 = vset.pattern.permute.xlu0 0
      %1768 = vperm.xlu0 %1767, %v1749
      %v1769 = vpop.permute.xlu0 %1768
      %1772 = vset.pattern.permute.xlu0 0
      %1773 = vperm.xlu0 %1772, %v1750
      %v1774 = vpop.permute.xlu0 %1773
      %1777 = vset.pattern.permute.xlu0 0
      %1778 = vperm.xlu0 %1777, %v1751
      %v1779 = vpop.permute.xlu0 %1778
      %1782 = vset.pattern.permute.xlu0 0
      %1783 = vperm.xlu0 %1782, %v1752
      %v1784 = vpop.permute.xlu0 %1783
      %1787 = vset.pattern.permute.xlu0 0
      %1788 = vperm.xlu0 %1787, %v1753
      %v1789 = vpop.permute.xlu0 %1788
      %v1791 = vperm.slane %v1755, 0
      %v1792 = vmul.f32 %v1759, %v1791
      %v1793 = vmul.f32 %v1764, %v1791
      %v1794 = vmul.f32 %v1769, %v1791
      %v1795 = vmul.f32 %v1774, %v1791
      %v1796 = vmul.f32 %v1779, %v1791
      %v1797 = vmul.f32 %v1784, %v1791
      %v1798 = vmul.f32 %v1789, %v1791
      %v1799 = vadd.f32 %v1740, %v1792
      %v1800 = vadd.f32 %v1741, %v1793
      %v1801 = vadd.f32 %v1742, %v1794
      %v1802 = vadd.f32 %v1743, %v1795
      %v1803 = vadd.f32 %v1744, %v1796
      %v1804 = vadd.f32 %v1745, %v1797
      %v1805 = vadd.f32 %v1746, %v1798
      %v1806 = vld [vmem:[%s1754 + $0x1] sm:$0x1]
      %1807 = vset.pattern.permute.xlu0 1
      %1808 = vperm.xlu0 %1807, %v1747
      %v1809 = vpop.permute.xlu0 %1808
      %1811 = vset.pattern.permute.xlu0 1
      %1812 = vperm.xlu0 %1811, %v1748
      %v1813 = vpop.permute.xlu0 %1812
      %1815 = vset.pattern.permute.xlu0 1
      %1816 = vperm.xlu0 %1815, %v1749
      %v1817 = vpop.permute.xlu0 %1816
      %1819 = vset.pattern.permute.xlu0 1
      %1820 = vperm.xlu0 %1819, %v1750
      %v1821 = vpop.permute.xlu0 %1820
      %1823 = vset.pattern.permute.xlu0 1
      %1824 = vperm.xlu0 %1823, %v1751
      %v1825 = vpop.permute.xlu0 %1824
      %1827 = vset.pattern.permute.xlu0 1
      %1828 = vperm.xlu0 %1827, %v1752
      %v1829 = vpop.permute.xlu0 %1828
      %1831 = vset.pattern.permute.xlu0 1
      %1832 = vperm.xlu0 %1831, %v1753
      %v1833 = vpop.permute.xlu0 %1832
      %v1835 = vperm.slane %v1806, 0
      %v1836 = vmul.f32 %v1809, %v1835
      %v1837 = vmul.f32 %v1813, %v1835
      %v1838 = vmul.f32 %v1817, %v1835
      %v1839 = vmul.f32 %v1821, %v1835
      %v1840 = vmul.f32 %v1825, %v1835
      %v1841 = vmul.f32 %v1829, %v1835
      %v1842 = vmul.f32 %v1833, %v1835
      %v1843 = vadd.f32 %v1799, %v1836
      %v1844 = vadd.f32 %v1800, %v1837
      %v1845 = vadd.f32 %v1801, %v1838
      %v1846 = vadd.f32 %v1802, %v1839
      %v1847 = vadd.f32 %v1803, %v1840
      %v1848 = vadd.f32 %v1804, %v1841
      %v1849 = vadd.f32 %v1805, %v1842
      %v1850 = vld [vmem:[%s1754 + $0x2] sm:$0x1]
      %1851 = vset.pattern.permute.xlu0 2
      %1852 = vperm.xlu0 %1851, %v1747
      %v1853 = vpop.permute.xlu0 %1852
      %1855 = vset.pattern.permute.xlu0 2
      %1856 = vperm.xlu0 %1855, %v1748
      %v1857 = vpop.permute.xlu0 %1856
      %1859 = vset.pattern.permute.xlu0 2
      %1860 = vperm.xlu0 %1859, %v1749
      %v1861 = vpop.permute.xlu0 %1860
      %1863 = vset.pattern.permute.xlu0 2
      %1864 = vperm.xlu0 %1863, %v1750
      %v1865 = vpop.permute.xlu0 %1864
      %1867 = vset.pattern.permute.xlu0 2
      %1868 = vperm.xlu0 %1867, %v1751
      %v1869 = vpop.permute.xlu0 %1868
      %1871 = vset.pattern.permute.xlu0 2
      %1872 = vperm.xlu0 %1871, %v1752
      %v1873 = vpop.permute.xlu0 %1872
      %1875 = vset.pattern.permute.xlu0 2
      %1876 = vperm.xlu0 %1875, %v1753
      %v1877 = vpop.permute.xlu0 %1876
      %v1879 = vperm.slane %v1850, 0
      %v1880 = vmul.f32 %v1853, %v1879
      %v1881 = vmul.f32 %v1857, %v1879
      %v1882 = vmul.f32 %v1861, %v1879
      %v1883 = vmul.f32 %v1865, %v1879
      %v1884 = vmul.f32 %v1869, %v1879
      %v1885 = vmul.f32 %v1873, %v1879
      %v1886 = vmul.f32 %v1877, %v1879
      %v1887 = vadd.f32 %v1843, %v1880
      %v1888 = vadd.f32 %v1844, %v1881
      %v1889 = vadd.f32 %v1845, %v1882
      %v1890 = vadd.f32 %v1846, %v1883
      %v1891 = vadd.f32 %v1847, %v1884
      %v1892 = vadd.f32 %v1848, %v1885
      %v1893 = vadd.f32 %v1849, %v1886
      %v1894 = vld [vmem:[%s1754 + $0x3] sm:$0x1]
      %1895 = vset.pattern.permute.xlu0 3
      %1896 = vperm.xlu0 %1895, %v1747
      %v1897 = vpop.permute.xlu0 %1896
      %1899 = vset.pattern.permute.xlu0 3
      %1900 = vperm.xlu0 %1899, %v1748
      %v1901 = vpop.permute.xlu0 %1900
      %1903 = vset.pattern.permute.xlu0 3
      %1904 = vperm.xlu0 %1903, %v1749
      %v1905 = vpop.permute.xlu0 %1904
      %1907 = vset.pattern.permute.xlu0 3
      %1908 = vperm.xlu0 %1907, %v1750
      %v1909 = vpop.permute.xlu0 %1908
      %1911 = vset.pattern.permute.xlu0 3
      %1912 = vperm.xlu0 %1911, %v1751
      %v1913 = vpop.permute.xlu0 %1912
      %1915 = vset.pattern.permute.xlu0 3
      %1916 = vperm.xlu0 %1915, %v1752
      %v1917 = vpop.permute.xlu0 %1916
      %1919 = vset.pattern.permute.xlu0 3
      %1920 = vperm.xlu0 %1919, %v1753
      %v1921 = vpop.permute.xlu0 %1920
      %v1923 = vperm.slane %v1894, 0
      %v1924 = vmul.f32 %v1897, %v1923
      %v1925 = vmul.f32 %v1901, %v1923
      %v1926 = vmul.f32 %v1905, %v1923
      %v1927 = vmul.f32 %v1909, %v1923
      %v1928 = vmul.f32 %v1913, %v1923
      %v1929 = vmul.f32 %v1917, %v1923
      %v1930 = vmul.f32 %v1921, %v1923
      %v1931 = vadd.f32 %v1887, %v1924
      %v1932 = vadd.f32 %v1888, %v1925
      %v1933 = vadd.f32 %v1889, %v1926
      %v1934 = vadd.f32 %v1890, %v1927
      %v1935 = vadd.f32 %v1891, %v1928
      %v1936 = vadd.f32 %v1892, %v1929
      %v1937 = vadd.f32 %v1893, %v1930
      %p1938 = scmp.eq.s32.totalorder %s19, 0
      %p1939 = scmp.eq.s32.totalorder %s20, 0
      %p1940 = pnand %p1938, %p1939
      %p1941 = pneg %p1940
      // Predicated region
      $region37: #{tpu_custom_call.1} parent=35 // pred_check
        _
      $region38: #{tpu_custom_call.1} parent=35 // pred_check_branch
        %1943 = sbr.rel (%p1940) target = $region40
      $region39: #{tpu_custom_call.1} parent=35 // pred_region
        %1944 = vst [vmem:[#allocation2] sm:$0x1] 0.0
        %1945 = vst [vmem:[#allocation3] sm:$0x1] 0.0
      $region40: #{tpu_custom_call.1} parent=35 // pred_fallthru
        _
      // Predicated region
      $region41: #{tpu_custom_call.1} parent=35 // pred_check
        %p1946 = pneg %p1938
      $region42: #{tpu_custom_call.1} parent=35 // pred_check_branch
        %1948 = sbr.rel (%p1946) target = $region44
      $region43: #{tpu_custom_call.1} parent=35 // pred_region
        %vm1949 = vcmask 1046528
        %v1950 = vsel %vm1949, %v1931, 0.0
        %v1951 = vsel %vm1949, %v1932, 0.0
        %v1952 = vadd.f32 %v1950, %v1951
        %v1953 = vsel %vm1949, %v1933, 0.0
        %v1954 = vadd.f32 %v1952, %v1953
        %v1955 = vsel %vm1949, %v1934, 0.0
        %v1956 = vadd.f32 %v1954, %v1955
        %v1957 = vsel %vm1949, %v1935, 0.0
        %v1958 = vadd.f32 %v1956, %v1957
        %v1959 = vsel %vm1949, %v1936, 0.0
        %v1960 = vadd.f32 %v1958, %v1959
        %v1961 = vsel %vm1949, %v1937, 0.0
        %v1962 = vadd.f32 %v1960, %v1961
        %v1963 = vsel %vm1949, %v1962, 0.0
        %v1964 = vrot.slane %v1963, 4
        %v1965 = vadd.f32 %v1963, %v1964
        %v1966 = vrot.slane %v1965, 2
        %v1967 = vadd.f32 %v1965, %v1966
        %v1968 = vrot.slane %v1967, 1
        %v1969 = vadd.f32 %v1967, %v1968
        %v1970 = vmul.f32 %v1931, %v1931
        %v1971 = vmul.f32 %v1932, %v1932
        %v1972 = vmul.f32 %v1933, %v1933
        %v1973 = vmul.f32 %v1934, %v1934
        %v1974 = vmul.f32 %v1935, %v1935
        %v1975 = vmul.f32 %v1936, %v1936
        %v1976 = vmul.f32 %v1937, %v1937
        %v1977 = vsel %vm1949, %v1970, 0.0
        %v1978 = vsel %vm1949, %v1971, 0.0
        %v1979 = vadd.f32 %v1977, %v1978
        %v1980 = vsel %vm1949, %v1972, 0.0
        %v1981 = vadd.f32 %v1979, %v1980
        %v1982 = vsel %vm1949, %v1973, 0.0
        %v1983 = vadd.f32 %v1981, %v1982
        %v1984 = vsel %vm1949, %v1974, 0.0
        %v1985 = vadd.f32 %v1983, %v1984
        %v1986 = vsel %vm1949, %v1975, 0.0
        %v1987 = vadd.f32 %v1985, %v1986
        %v1988 = vsel %vm1949, %v1976, 0.0
        %v1989 = vadd.f32 %v1987, %v1988
        %v1990 = vsel %vm1949, %v1989, 0.0
        %v1991 = vrot.slane %v1990, 4
        %v1992 = vadd.f32 %v1990, %v1991
        %v1993 = vrot.slane %v1992, 2
        %v1994 = vadd.f32 %v1992, %v1993
        %v1995 = vrot.slane %v1994, 1
        %v1996 = vadd.f32 %v1994, %v1995
        %v1997 = vld [vmem:[#allocation2] sm:$0x1]
        %v1998 = vadd.f32 %v1997, %v1969
        %1999 = vst [vmem:[#allocation2] sm:$0x1] %v1998
        %v2000 = vld [vmem:[#allocation3] sm:$0x1]
        %v2001 = vadd.f32 %v2000, %v1996
        %2002 = vst [vmem:[#allocation3] sm:$0x1] %v2001
      $region44: #{tpu_custom_call.1} parent=35 // pred_fallthru
        _
      %p2003 = scmp.eq.s32.totalorder %s19, 1
      %p2004 = pnand %p2003, %p1939
      %p2005 = pneg %p2004
      // Predicated region
      $region45: #{tpu_custom_call.1} parent=35 // pred_check
        _
      $region46: #{tpu_custom_call.1} parent=35 // pred_check_branch
        %2007 = sbr.rel (%p2004) target = $region48
      $region47: #{tpu_custom_call.1} parent=35 // pred_region
        %v2008 = vld [vmem:[#allocation2] sm:$0x1]
        %v2009 = vmul.f32 %v2008, 0.010204081
        %v2010 = vld [vmem:[#allocation3] sm:$0x1]
        %v2011 = vmul.f32 %v2010, 0.010204081
        %v2012 = vmul.f32 %v2009, %v2009
        %v2013 = vsub.f32 %v2011, %v2012
        %v2014 = vld [vmem:[%s2] sm:$0x1]
        %v2015 = vadd.f32 %v2013, 1e-05
        %v2016 = vrsqrt.pop %v2015
        %v2017 = vmul.f32 %v2016, %v2015
        %v2018 = vmul.f32 %v2017, %v2016
        %v2019 = vmul.f32 0.5, %v2018
        %v2020 = vsub.f32 1.5, %v2019
        %v2021 = vmul.f32 %v2016, %v2020
        %vm2022 = vweird.f32 %v2015
        %vm2023 = vweird.f32 %v2016
        %vm2024 = vmor %vm2022, %vm2023
        %v2025 = vsel %vm2024, %v2016, %v2021
        %v2026 = vmul.f32 %v2014, %v2025
        %2027 = vst [vmem:[#allocation4] sm:$0x1] %v2026
        %v2028 = vld [vmem:[%s3] sm:$0x1]
        %v2029 = vmul.f32 %v2009, %v2026
        %v2030 = vsub.f32 %v2028, %v2029
        %2031 = vst [vmem:[#allocation5] sm:$0x1] %v2030
      $region48: #{tpu_custom_call.1} parent=35 // pred_fallthru
        _
      // Predicated region
      $region49: #{tpu_custom_call.1} parent=35 // pred_check
        %p2032 = pneg %p2003
      $region50: #{tpu_custom_call.1} parent=35 // pred_check_branch
        %2034 = sbr.rel (%p2032) target = $region52
      $region51: #{tpu_custom_call.1} parent=35 // pred_region
        %v2035 = vld [vmem:[#allocation4] sm:$0x1]
        %v2037 = vperm.slane %v2035, 0
        %v2039 = vmul.f32 %v1931, %v2037
        %v2040 = vmul.f32 %v1932, %v2037
        %v2041 = vmul.f32 %v1933, %v2037
        %v2042 = vmul.f32 %v1934, %v2037
        %v2043 = vmul.f32 %v1935, %v2037
        %v2044 = vmul.f32 %v1936, %v2037
        %v2045 = vmul.f32 %v1937, %v2037
        %v2046 = vld [vmem:[#allocation5] sm:$0x1]
        %v2048 = vperm.slane %v2046, 0
        %v2050 = vadd.f32 %v2039, %v2048
        %v2051 = vadd.f32 %v2040, %v2048
        %v2052 = vadd.f32 %v2041, %v2048
        %v2053 = vadd.f32 %v2042, %v2048
        %v2054 = vadd.f32 %v2043, %v2048
        %v2055 = vadd.f32 %v2044, %v2048
        %v2056 = vadd.f32 %v2045, %v2048
        %v2057 = vmax.f32 %v2050, 0.0
        %v2058 = vmax.f32 %v2051, 0.0
        %v2059 = vmax.f32 %v2052, 0.0
        %v2060 = vmax.f32 %v2053, 0.0
        %v2061 = vmax.f32 %v2054, 0.0
        %v2062 = vmax.f32 %v2055, 0.0
        %v2063 = vmax.f32 %v2056, 0.0
        %2064 = vst [vmem:[%s213] sm:$0x7f] %v2057
        %2065 = vst [vmem:[%s213 + $0x8] sm:$0x7f] %v2058
        %2066 = vst [vmem:[%s213 + $0x10] sm:$0x7f] %v2059
        %2067 = vst [vmem:[%s213 + $0x18] sm:$0x7f] %v2060
        %2068 = vst [vmem:[%s213 + $0x20] sm:$0x7f] %v2061
        %2069 = vst [vmem:[%s213 + $0x28] sm:$0x7f] %v2062
        %2070 = vst [vmem:[%s213 + $0x30] sm:$0x7f] %v2063
      $region52: #{tpu_custom_call.1} parent=35 // pred_fallthru
        _
      %s2071 = smul.u32 %s20, %s19
      %p2072 = scmp.lt.s32.totalorder %s2071, 1
      %s2073 = scalar_select %p2072, %s2071, 1
      %s2074 = smul.addr %s2073, 7
      %s2075 = smul.addr %s2074, 8
      %s2076 = scalar_lea.vmem %s4, %s2075
      // Predicated region
      $region53: #{tpu_custom_call.1} parent=35 // pred_check
        %p2077 = pneg %p136
      $region54: #{tpu_custom_call.1} parent=35 // pred_check_branch
        %2079 = sbr.rel (%p2077) target = $region56
      $region55: #{tpu_custom_call.1} parent=35 // pred_region
        %s2080 = smul.u32 %s20, %s19
      $region56: #{tpu_custom_call.1} parent=35 // pred_fallthru
        _
    $region36: #{tpu_custom_call.1} parent=5 // pred_fallthru
      _
    %p2081 = scmp.le.s32.totalorder 2, %s10
    // Predicated region
    $region57: #{tpu_custom_call.1} parent=5 // pred_check
      %p2082 = pneg %p2081
    $region58: #{tpu_custom_call.1} parent=5 // pred_check_branch
      %2084 = sbr.rel (%p2082) target = $region60
    $region59: #{tpu_custom_call.1} parent=5 // pred_region
      %s2085 = ssub.s32 %s10, 2
      // Predicated region
      $region61: #{tpu_custom_call.1} parent=59 // pred_check
        %p2086 = pneg %p142
      $region62: #{tpu_custom_call.1} parent=59 // pred_check_branch
        %2088 = sbr.rel (%p2086) target = $region64
      $region63: #{tpu_custom_call.1} parent=59 // pred_region
        %s2089 = smul.u32 %s22, %s21
        %p2090 = scmp.lt.s32.totalorder %s2089, 1
        %s2091 = scalar_select %p2090, %s2089, 1
        %s2092 = smul.addr %s2091, 7
        %s2093 = smul.addr %s2092, 8
        %s2094 = scalar_lea.vmem %s4, %s2093
      $region64: #{tpu_custom_call.1} parent=59 // pred_fallthru
        _
    $region60: #{tpu_custom_call.1} parent=5 // pred_fallthru
      _
  $region6: #{tpu_custom_call.1} parent=0 // loop_footer
    %s14 = sadd.s32 1, %s10
  $region7: #{tpu_custom_call.1} parent=0 // loop_footer_branch
    %9 = sbr.rel target = $region3
  $region8: #{tpu_custom_call.1} parent=0 // loop_exit
    _

</llo_original>
